<compile_context>
chip_gen: v6e
topology: v6e:2x2x1
jax: 0.10.0
libtpu: 0.0.40
codegen_flags: <defaults>
</compile_context>

<pallas_src>
import functools
import math

import jax
import jax.numpy as jnp
from jax.experimental import pallas as pl
from jax.experimental.pallas import tpu as pltpu

_DEFAULT_TILE_H = 128  # target rows per grid step (multiple of 8)


def _choose_tile_h(h, target=_DEFAULT_TILE_H):
    """Largest multiple-of-8 divisor of `h` that is <= target, else the full h."""
    if h <= target:
        return h
    start = (target // 8) * 8
    for th in range(start, 7, -8):
        if h % th == 0:
            return th
    return h


def _vmem_limit_bytes():
    """~70% of this chip's VMEM (generation-aware); conservative fallback off-TPU."""
    try:
        return int(pltpu.get_tpu_info().vmem_capacity_bytes * 7 // 10)
    except Exception:
        return 48 * 1024 * 1024


def _dice_ce_partials_kernel(yp_ref, yt_ref, top_ref, bot_ref, out_ref, *,
                             n_classes, epsilon, edge_weight, area_weights,
                             onehot, n_pad_rows):
    """One (image, H-tile) per grid step. Emits lane-wise partial sums:
         rows [0, C)    : sum_h prob_c * true_c * valid   (dice intersection)
         rows [C, 2C)   : sum_h prob_c * valid            (dice pred sum)
         rows [2C, 3C)  : sum_h true_c * valid            (dice true sum)
         row  3C        : sum_h valid                     (n_valid partial)
         row  3C + 1    : sum_h ce_mat * log_term * valid (CE partial)
       (+ zero rows up to a sublane multiple).  Lanes / tiles / batch are reduced
       in the wrapper, so every grid step owns its output block (no accumulator).
    """
    C = n_classes
    TH = yp_ref.shape[2]
    W = yp_ref.shape[3]
    f32 = jnp.float32

    def trunc(v):
        # torch applies `.to(torch.int8)` before the edge detector; skip the
        # convert round-trip when targets are known one-hot {0, 1}.
        return v if onehot else v.astype(jnp.int32).astype(f32)

    # ---- pass 1: channel max (only `m` stays live) -------------------------
    m = yp_ref[0, 0, :, :].astype(f32)
    for c in range(1, C):
        m = jnp.maximum(m, yp_ref[0, c, :, :].astype(f32))

    # ---- pass 2: exps / softmax denom / valid mask (exp computed once) -----
    exps = []
    denom = None
    tsum = None
    for c in range(C):
        e = jnp.exp(yp_ref[0, c, :, :].astype(f32) - m)
        exps.append(e)
        denom = e if denom is None else denom + e
        tc = yt_ref[0, c, :, :].astype(f32)
        tsum = tc if tsum is None else tsum + tc

    inv_denom = pl.reciprocal(denom, approx=False)  # exact; approx=True also fine for a loss
    log_denom = jnp.log(denom)                      # single log per tile (log-softmax CE)
    log_eps = f32(math.log(epsilon))
    validf = (tsum != 0.0).astype(f32)              # pixels that have a labelled class

    # local-row masks for splicing the halo rows into the rolled neighbours
    lrow = jax.lax.broadcasted_iota(jnp.int32, (TH, 1), 0)
    is_first = lrow == 0
    is_last = lrow == TH - 1

    ce_mat = jnp.zeros((TH, W), f32)
    log_term = jnp.zeros((TH, W), f32)
    inter_rows, pred_rows, true_rows = [], [], []

    for c in range(C):
        x_c = yp_ref[0, c, :, :].astype(f32)   # re-read from VMEM (cheap) instead of
        t_c = yt_ref[0, c, :, :].astype(f32)   # keeping C live (TH, W) copies around
        prob_c = exps[c] * inv_denom

        tv = t_c * validf
        inter_rows.append(jnp.sum(prob_c * tv, axis=0, keepdims=True))
        pred_rows.append(jnp.sum(prob_c * validf, axis=0, keepdims=True))
        true_rows.append(jnp.sum(tv, axis=0, keepdims=True))

        # CE: log(clamp(softmax_c, eps)) == max(log_softmax_c, log(eps))
        log_pred = jnp.maximum(x_c - m - log_denom, log_eps)
        log_term = log_term + t_c * log_pred

        # edge map along H: XLU rolls (non-negative shifts only) with halo rows
        # spliced into the wrapped positions.  Image-boundary rows compare against
        # themselves (the wrapper clamps the halo indices) -> no edge there,
        # matching torch's zero-row padding.
        ti = trunc(t_c)
        up = jnp.where(is_first, trunc(top_ref[0, 0, c:c + 1, :]),
                       pltpu.roll(ti, shift=1, axis=0))
        down = jnp.where(is_last, trunc(bot_ref[0, 0, c:c + 1, :]),
                         pltpu.roll(ti, shift=TH - 1, axis=0))
        is_edge = (ti - up > 0.0) | (ti - down > 0.0)
        ce_mat = ce_mat + jnp.where(is_edge, f32(edge_weight),
                                    ti * f32(area_weights[c]))

    rows = inter_rows + pred_rows + true_rows
    rows.append(jnp.sum(validf, axis=0, keepdims=True))
    rows.append(jnp.sum(ce_mat * log_term * validf, axis=0, keepdims=True))
    if n_pad_rows:
        rows.append(jnp.zeros((n_pad_rows, W), f32))
    # single dense (sublane-aligned) store instead of 3C+2 masked row stores
    out_ref[0, 0, :, :] = jnp.concatenate(rows, axis=0)


class DiceCELossPallas:
    def __init__(self, class_weights, nc=4, ce_weight=1.0, dice_weight=1.0,
                 edge_weight=10, area_weights=(1, 5, 5, 1),
                 assume_onehot_targets=True):
        self.class_weights = jnp.asarray(class_weights, jnp.float32)
        self.n_classes = nc
        self.ce_weight = float(ce_weight)
        self.dice_weight = float(dice_weight)
        self.edge_weight = float(edge_weight)
        if len(area_weights) != nc:
            aw = (1,) + (5,) * (nc - 2) + (1,)
        else:
            aw = tuple(area_weights)
        self.area_weights = tuple(float(a) for a in aw)
        self.epsilon = 1e-15
        # If False, reproduce torch's `.to(torch.int8)` truncation inside the edge
        # maps (only matters when y_true is not a {0,1} one-hot tensor).
        self.assume_onehot_targets = bool(assume_onehot_targets)

    def __call__(self, y_pred, y_true, smooth=1.0, tile_h=None):
        B, C, H, W = y_pred.shape
        assert C == self.n_classes
        assert y_true.shape == (B, C, H, W)

        if tile_h is None:
            TH = _choose_tile_h(H)
        else:
            TH = int(tile_h)
            if TH >= H or H % TH != 0 or TH % 8 != 0:
                TH = H          # fallback: one full image per grid step
        T = H // TH
        NP = ((3 * C + 2 + 7) // 8) * 8          # sublane-padded partial-row count

        # Halo rows for the H-direction edge detector: the single row just above /
        # below each tile, clamped into the image.  Tiny (B, T, C, W) f32 arrays.
        starts = jnp.arange(T, dtype=jnp.int32) * TH
        top_idx = jnp.maximum(starts - 1, 0)
        bot_idx = jnp.minimum(starts + TH, H - 1)
        top_rows = jnp.transpose(jnp.take(y_true, top_idx, axis=2),
                                 (0, 2, 1, 3)).astype(jnp.float32)   # (B, T, C, W)
        bot_rows = jnp.transpose(jnp.take(y_true, bot_idx, axis=2),
                                 (0, 2, 1, 3)).astype(jnp.float32)   # (B, T, C, W)

        kernel = functools.partial(
            _dice_ce_partials_kernel,
            n_classes=C,
            epsilon=float(self.epsilon),
            edge_weight=self.edge_weight,
            area_weights=self.area_weights,
            onehot=self.assume_onehot_targets,
            n_pad_rows=NP - (3 * C + 2),
        )
        partials = pl.pallas_call(
            kernel,
            out_shape=jax.ShapeDtypeStruct((B, T, NP, W), jnp.float32),
            grid=(B, T),
            in_specs=[
                pl.BlockSpec((1, C, TH, W), lambda b, t: (b, 0, t, 0)),  # y_pred slab
                pl.BlockSpec((1, C, TH, W), lambda b, t: (b, 0, t, 0)),  # y_true slab
                pl.BlockSpec((1, 1, C, W), lambda b, t: (b, t, 0, 0)),   # top halo rows
                pl.BlockSpec((1, 1, C, W), lambda b, t: (b, t, 0, 0)),   # bottom halo rows
            ],
            out_specs=pl.BlockSpec((1, 1, NP, W), lambda b, t: (b, t, 0, 0)),
            compiler_params=pltpu.CompilerParams(
                dimension_semantics=("parallel", "parallel"),   # B and H-tiles
                vmem_limit_bytes=_vmem_limit_bytes(),
            ),
        )(y_pred, y_true, top_rows, bot_rows)   # kernel casts after the DMA

        # ---- tiny finalize in plain JAX (reduce batch, tiles and lanes) ----
        p = jnp.sum(partials, axis=(0, 1, 3))                    # (NP,)
        inter = p[0:C]
        s_pred = p[C:2 * C]
        s_true = p[2 * C:3 * C]
        n_valid = p[3 * C]       # NOTE: 0 valid pixels -> NaN, same as torch
        ce_sum = p[3 * C + 1]

        smooth = jnp.float32(smooth)
        dice = jnp.sum((2.0 * self.class_weights * inter + smooth)
                       / (s_pred + s_true + smooth))
        ce_loss = -ce_sum / n_valid
        return self.ce_weight * ce_loss + self.dice_weight * (1.0 - dice)


def dice_ce_reference(y_pred, y_true, class_weights, smooth, epsilon,
                      ce_weight, dice_weight, edge_weight, area_weights):
    """Pure-JAX mirror of the PyTorch forward, for validation."""
    y_pred = y_pred.astype(jnp.float32)
    y_true = y_true.astype(jnp.float32)
    B, C, H, W = y_pred.shape
    p = jax.nn.softmax(y_pred, axis=1)
    no_class = jnp.sum(y_true, axis=1) == 0
    valid = (~no_class).astype(jnp.float32)
    n_valid = jnp.sum(valid)
    dice = 0.0
    ce_mat = jnp.zeros((B, H, W), jnp.float32)
    zrow = jnp.zeros((B, 1, W), jnp.float32)
    for c in range(C):
        pred_c, true_c = p[:, c], y_true[:, c]
        inter = jnp.sum(pred_c * true_c * valid)
        dice = dice + (2.0 * class_weights[c] * inter + smooth) / (
            jnp.sum(pred_c * valid) + jnp.sum(true_c * valid) + smooth)
        ti = true_c.astype(jnp.int32).astype(jnp.float32)
        et = jnp.concatenate([zrow, jnp.clip(ti[:, 1:, :] - ti[:, :-1, :], 0, 1)], axis=1)
        eb = jnp.concatenate([jnp.clip(ti[:, :-1, :] - ti[:, 1:, :], 0, 1), zrow], axis=1)
        edges = et + eb
        tne = jnp.where(edges > 0, 0.0, ti)
        ce_mat = ce_mat + jnp.where(edges > 0, float(edge_weight), 0.0) + tne * float(area_weights[c])
    ce_loss = 0.0
    for c in range(C):
        pc = jnp.maximum(p[:, c], epsilon)
        ce_loss = ce_loss - jnp.sum(ce_mat * y_true[:, c] * jnp.log(pc) * valid) / n_valid
    return ce_weight * ce_loss + dice_weight * (1.0 - dice)


if __name__ == "__main__":
    key = jax.random.PRNGKey(0)
    k1, k2, k3, k4 = jax.random.split(key, 4)

    C = 4
    class_weights = jnp.array([1.0, 2.0, 2.0, 1.0], dtype=jnp.float32)
    loss_fn = DiceCELossPallas(class_weights, nc=C)

    def make_inputs(kp, kl, B, H, W):
        y_pred = jax.random.normal(kp, (B, C, H, W), dtype=jnp.float32)
        # labels in [0, C]; label == C means "no class" (all-zero one-hot column)
        labels = jax.random.randint(kl, (B, H, W), 0, C + 1)
        one_hot = labels[:, None, :, :] == jnp.arange(C)[None, :, None, None]
        return y_pred, one_hot.astype(jnp.int8)   # int8 one-hot: 4x less HBM traffic

    # required small example: B=2, C=4, 16x16 (single H-tile path)
    y_pred, y_true = make_inputs(k1, k2, 2, 16, 16)
    loss = jax.block_until_ready(loss_fn(y_pred, y_true, smooth=1.0))
    ref = dice_ce_reference(y_pred, y_true, class_weights, 1.0, loss_fn.epsilon,
                            loss_fn.ce_weight, loss_fn.dice_weight,
                            loss_fn.edge_weight, loss_fn.area_weights)
    assert jnp.allclose(loss, ref, rtol=1e-3, atol=1e-2), (float(loss), float(ref))

    # exercise the multi-tile (halo) path: H=32 split into two 16-row tiles
    y_pred2, y_true2 = make_inputs(k3, k4, 2, 32, 16)
    loss2 = jax.block_until_ready(loss_fn(y_pred2, y_true2, smooth=1.0, tile_h=16))
    ref2 = dice_ce_reference(y_pred2, y_true2, class_weights, 1.0, loss_fn.epsilon,
                             loss_fn.ce_weight, loss_fn.dice_weight,
                             loss_fn.edge_weight, loss_fn.area_weights)
    assert jnp.allclose(loss2, ref2, rtol=1e-3, atol=1e-2), (float(loss2), float(ref2))

    print("KERNEL_OK")
</pallas_src>

<mosaic_0001>
module attributes {stable_mosaic.version = 11 : i64} {
  func.func @_dice_ce_partials_kernel(%arg0: i32, %arg1: i32, %arg2: memref<1x4x16x16xf32, #tpu.memory_space<vmem>>, %arg3: memref<1x4x16x16xi8, #tpu.memory_space<vmem>>, %arg4: memref<1x1x4x16xf32, #tpu.memory_space<vmem>>, %arg5: memref<1x1x4x16xf32, #tpu.memory_space<vmem>>, %arg6: memref<1x1x16x16xf32, #tpu.memory_space<vmem>>) attributes {dimension_semantics = [#tpu.dimension_semantics<parallel>, #tpu.dimension_semantics<parallel>], iteration_bounds = array<i64: 2, 1>, scalar_prefetch = 0 : i64, scratch_operands = 0 : i64, tpu.core_type = #tpu.core_type<tc>, window_params = [{transform_indices = @transform_0, window_bounds = array<i64: 1, 4, 16, 16>}, {transform_indices = @transform_1, window_bounds = array<i64: 1, 4, 16, 16>}, {transform_indices = @transform_2, window_bounds = array<i64: 1, 1, 4, 16>}, {transform_indices = @transform_3, window_bounds = array<i64: 1, 1, 4, 16>}, {transform_indices = @transform_4, window_bounds = array<i64: 1, 1, 16, 16>}]} {
    %c0 = arith.constant 0 : index
    %c0_0 = arith.constant 0 : index
    %c0_1 = arith.constant 0 : index
    %c0_2 = arith.constant 0 : index
    %0 = vector.load %arg2[%c0, %c0_0, %c0_1, %c0_2] : memref<1x4x16x16xf32, #tpu.memory_space<vmem>>, vector<1x1x16x16xf32>
    %1 = vector.shape_cast %0 : vector<1x1x16x16xf32> to vector<16x16xf32>
    %c0_3 = arith.constant 0 : index
    %c1 = arith.constant 1 : index
    %c0_4 = arith.constant 0 : index
    %c0_5 = arith.constant 0 : index
    %2 = vector.load %arg2[%c0_3, %c1, %c0_4, %c0_5] : memref<1x4x16x16xf32, #tpu.memory_space<vmem>>, vector<1x1x16x16xf32>
    %3 = vector.shape_cast %2 : vector<1x1x16x16xf32> to vector<16x16xf32>
    %4 = arith.maximumf %1, %3 : vector<16x16xf32>
    %c0_6 = arith.constant 0 : index
    %c2 = arith.constant 2 : index
    %c0_7 = arith.constant 0 : index
    %c0_8 = arith.constant 0 : index
    %5 = vector.load %arg2[%c0_6, %c2, %c0_7, %c0_8] : memref<1x4x16x16xf32, #tpu.memory_space<vmem>>, vector<1x1x16x16xf32>
    %6 = vector.shape_cast %5 : vector<1x1x16x16xf32> to vector<16x16xf32>
    %7 = arith.maximumf %4, %6 : vector<16x16xf32>
    %c0_9 = arith.constant 0 : index
    %c3 = arith.constant 3 : index
    %c0_10 = arith.constant 0 : index
    %c0_11 = arith.constant 0 : index
    %8 = vector.load %arg2[%c0_9, %c3, %c0_10, %c0_11] : memref<1x4x16x16xf32, #tpu.memory_space<vmem>>, vector<1x1x16x16xf32>
    %9 = vector.shape_cast %8 : vector<1x1x16x16xf32> to vector<16x16xf32>
    %10 = arith.maximumf %7, %9 : vector<16x16xf32>
    %c0_12 = arith.constant 0 : index
    %c0_13 = arith.constant 0 : index
    %c0_14 = arith.constant 0 : index
    %c0_15 = arith.constant 0 : index
    %11 = vector.load %arg2[%c0_12, %c0_13, %c0_14, %c0_15] : memref<1x4x16x16xf32, #tpu.memory_space<vmem>>, vector<1x1x16x16xf32>
    %12 = vector.shape_cast %11 : vector<1x1x16x16xf32> to vector<16x16xf32>
    %13 = arith.subf %12, %10 : vector<16x16xf32>
    %14 = math.exp %13 : vector<16x16xf32>
    %c0_16 = arith.constant 0 : index
    %c0_17 = arith.constant 0 : index
    %c0_18 = arith.constant 0 : index
    %c0_19 = arith.constant 0 : index
    %15 = vector.load %arg3[%c0_16, %c0_17, %c0_18, %c0_19] : memref<1x4x16x16xi8, #tpu.memory_space<vmem>>, vector<1x1x16x16xi8>
    %16 = vector.shape_cast %15 : vector<1x1x16x16xi8> to vector<16x16xi8>
    %17 = arith.sitofp %16 : vector<16x16xi8> to vector<16x16xf32>
    %c0_20 = arith.constant 0 : index
    %c1_21 = arith.constant 1 : index
    %c0_22 = arith.constant 0 : index
    %c0_23 = arith.constant 0 : index
    %18 = vector.load %arg2[%c0_20, %c1_21, %c0_22, %c0_23] : memref<1x4x16x16xf32, #tpu.memory_space<vmem>>, vector<1x1x16x16xf32>
    %19 = vector.shape_cast %18 : vector<1x1x16x16xf32> to vector<16x16xf32>
    %20 = arith.subf %19, %10 : vector<16x16xf32>
    %21 = math.exp %20 : vector<16x16xf32>
    %22 = arith.addf %14, %21 : vector<16x16xf32>
    %c0_24 = arith.constant 0 : index
    %c1_25 = arith.constant 1 : index
    %c0_26 = arith.constant 0 : index
    %c0_27 = arith.constant 0 : index
    %23 = vector.load %arg3[%c0_24, %c1_25, %c0_26, %c0_27] : memref<1x4x16x16xi8, #tpu.memory_space<vmem>>, vector<1x1x16x16xi8>
    %24 = vector.shape_cast %23 : vector<1x1x16x16xi8> to vector<16x16xi8>
    %25 = arith.sitofp %24 : vector<16x16xi8> to vector<16x16xf32>
    %26 = arith.addf %17, %25 : vector<16x16xf32>
    %c0_28 = arith.constant 0 : index
    %c2_29 = arith.constant 2 : index
    %c0_30 = arith.constant 0 : index
    %c0_31 = arith.constant 0 : index
    %27 = vector.load %arg2[%c0_28, %c2_29, %c0_30, %c0_31] : memref<1x4x16x16xf32, #tpu.memory_space<vmem>>, vector<1x1x16x16xf32>
    %28 = vector.shape_cast %27 : vector<1x1x16x16xf32> to vector<16x16xf32>
    %29 = arith.subf %28, %10 : vector<16x16xf32>
    %30 = math.exp %29 : vector<16x16xf32>
    %31 = arith.addf %22, %30 : vector<16x16xf32>
    %c0_32 = arith.constant 0 : index
    %c2_33 = arith.constant 2 : index
    %c0_34 = arith.constant 0 : index
    %c0_35 = arith.constant 0 : index
    %32 = vector.load %arg3[%c0_32, %c2_33, %c0_34, %c0_35] : memref<1x4x16x16xi8, #tpu.memory_space<vmem>>, vector<1x1x16x16xi8>
    %33 = vector.shape_cast %32 : vector<1x1x16x16xi8> to vector<16x16xi8>
    %34 = arith.sitofp %33 : vector<16x16xi8> to vector<16x16xf32>
    %35 = arith.addf %26, %34 : vector<16x16xf32>
    %c0_36 = arith.constant 0 : index
    %c3_37 = arith.constant 3 : index
    %c0_38 = arith.constant 0 : index
    %c0_39 = arith.constant 0 : index
    %36 = vector.load %arg2[%c0_36, %c3_37, %c0_38, %c0_39] : memref<1x4x16x16xf32, #tpu.memory_space<vmem>>, vector<1x1x16x16xf32>
    %37 = vector.shape_cast %36 : vector<1x1x16x16xf32> to vector<16x16xf32>
    %38 = arith.subf %37, %10 : vector<16x16xf32>
    %39 = math.exp %38 : vector<16x16xf32>
    %40 = arith.addf %31, %39 : vector<16x16xf32>
    %c0_40 = arith.constant 0 : index
    %c3_41 = arith.constant 3 : index
    %c0_42 = arith.constant 0 : index
    %c0_43 = arith.constant 0 : index
    %41 = vector.load %arg3[%c0_40, %c3_41, %c0_42, %c0_43] : memref<1x4x16x16xi8, #tpu.memory_space<vmem>>, vector<1x1x16x16xi8>
    %42 = vector.shape_cast %41 : vector<1x1x16x16xi8> to vector<16x16xi8>
    %43 = arith.sitofp %42 : vector<16x16xi8> to vector<16x16xf32>
    %44 = arith.addf %35, %43 : vector<16x16xf32>
    %45 = tpu.reciprocal %40 : vector<16x16xf32> -> vector<16x16xf32>
    %46 = math.log %40 : vector<16x16xf32>
    %cst = arith.constant 0.000000e+00 : f32
    %47 = vector.broadcast %cst : f32 to vector<16x16xf32>
    %48 = arith.cmpf one, %44, %47 : vector<16x16xf32>
    %49 = arith.extui %48 : vector<16x16xi1> to vector<16x16xi32>
    %50 = arith.sitofp %49 : vector<16x16xi32> to vector<16x16xf32>
    %51 = tpu.iota {dimensions = array<i32: 0>} : vector<16x1xi32>
    %c0_i32 = arith.constant 0 : i32
    %52 = vector.broadcast %c0_i32 : i32 to vector<16x1xi32>
    %53 = arith.cmpi eq, %51, %52 : vector<16x1xi32>
    %c15_i32 = arith.constant 15 : i32
    %54 = vector.broadcast %c15_i32 : i32 to vector<16x1xi32>
    %55 = arith.cmpi eq, %51, %54 : vector<16x1xi32>
    %cst_44 = arith.constant 0.000000e+00 : f32
    %56 = vector.broadcast %cst_44 : f32 to vector<16x16xf32>
    %cst_45 = arith.constant 0.000000e+00 : f32
    %57 = vector.broadcast %cst_45 : f32 to vector<16x16xf32>
    %c0_46 = arith.constant 0 : index
    %c0_47 = arith.constant 0 : index
    %c0_48 = arith.constant 0 : index
    %c0_49 = arith.constant 0 : index
    %58 = vector.load %arg2[%c0_46, %c0_47, %c0_48, %c0_49] : memref<1x4x16x16xf32, #tpu.memory_space<vmem>>, vector<1x1x16x16xf32>
    %59 = vector.shape_cast %58 : vector<1x1x16x16xf32> to vector<16x16xf32>
    %c0_50 = arith.constant 0 : index
    %c0_51 = arith.constant 0 : index
    %c0_52 = arith.constant 0 : index
    %c0_53 = arith.constant 0 : index
    %60 = vector.load %arg3[%c0_50, %c0_51, %c0_52, %c0_53] : memref<1x4x16x16xi8, #tpu.memory_space<vmem>>, vector<1x1x16x16xi8>
    %61 = vector.shape_cast %60 : vector<1x1x16x16xi8> to vector<16x16xi8>
    %62 = arith.sitofp %61 : vector<16x16xi8> to vector<16x16xf32>
    %63 = arith.mulf %14, %45 : vector<16x16xf32>
    %64 = arith.mulf %62, %50 : vector<16x16xf32>
    %65 = arith.mulf %63, %64 : vector<16x16xf32>
    %cst_54 = arith.constant dense<0.000000e+00> : vector<16xf32>
    %66 = vector.multi_reduction <add>, %65, %cst_54 [0] : vector<16x16xf32> to vector<16xf32>
    %67 = vector.shape_cast %66 : vector<16xf32> to vector<1x16xf32>
    %68 = arith.mulf %63, %50 : vector<16x16xf32>
    %cst_55 = arith.constant dense<0.000000e+00> : vector<16xf32>
    %69 = vector.multi_reduction <add>, %68, %cst_55 [0] : vector<16x16xf32> to vector<16xf32>
    %70 = vector.shape_cast %69 : vector<16xf32> to vector<1x16xf32>
    %cst_56 = arith.constant dense<0.000000e+00> : vector<16xf32>
    %71 = vector.multi_reduction <add>, %64, %cst_56 [0] : vector<16x16xf32> to vector<16xf32>
    %72 = vector.shape_cast %71 : vector<16xf32> to vector<1x16xf32>
    %73 = arith.subf %59, %10 : vector<16x16xf32>
    %74 = arith.subf %73, %46 : vector<16x16xf32>
    %cst_57 = arith.constant -34.5387764 : f32
    %75 = vector.broadcast %cst_57 : f32 to vector<16x16xf32>
    %76 = arith.maximumf %74, %75 : vector<16x16xf32>
    %77 = arith.mulf %62, %76 : vector<16x16xf32>
    %78 = arith.addf %57, %77 : vector<16x16xf32>
    %c0_58 = arith.constant 0 : index
    %c0_59 = arith.constant 0 : index
    %c0_60 = arith.constant 0 : index
    %c0_61 = arith.constant 0 : index
    %79 = vector.load %arg4[%c0_58, %c0_59, %c0_60, %c0_61] : memref<1x1x4x16xf32, #tpu.memory_space<vmem>>, vector<1x1x1x16xf32>
    %80 = vector.shape_cast %79 : vector<1x1x1x16xf32> to vector<1x16xf32>
    %c1_i32 = arith.constant 1 : i32
    %81 = tpu.dynamic_rotate %62 by %c1_i32 dim 0 : vector<16x16xf32>, i32 -> vector<16x16xf32>
    %82 = vector.shape_cast %53 : vector<16x1xi1> to vector<16x1xi1>
    %83 = vector.broadcast %82 : vector<16x1xi1> to vector<16x16xi1>
    %84 = vector.shape_cast %80 : vector<1x16xf32> to vector<1x16xf32>
    %85 = vector.broadcast %84 : vector<1x16xf32> to vector<16x16xf32>
    %86 = arith.select %83, %85, %81 : vector<16x16xi1>, vector<16x16xf32>
    %c0_62 = arith.constant 0 : index
    %c0_63 = arith.constant 0 : index
    %c0_64 = arith.constant 0 : index
    %c0_65 = arith.constant 0 : index
    %87 = vector.load %arg5[%c0_62, %c0_63, %c0_64, %c0_65] : memref<1x1x4x16xf32, #tpu.memory_space<vmem>>, vector<1x1x1x16xf32>
    %88 = vector.shape_cast %87 : vector<1x1x1x16xf32> to vector<1x16xf32>
    %c15_i32_66 = arith.constant 15 : i32
    %89 = tpu.dynamic_rotate %62 by %c15_i32_66 dim 0 : vector<16x16xf32>, i32 -> vector<16x16xf32>
    %90 = vector.shape_cast %55 : vector<16x1xi1> to vector<16x1xi1>
    %91 = vector.broadcast %90 : vector<16x1xi1> to vector<16x16xi1>
    %92 = vector.shape_cast %88 : vector<1x16xf32> to vector<1x16xf32>
    %93 = vector.broadcast %92 : vector<1x16xf32> to vector<16x16xf32>
    %94 = arith.select %91, %93, %89 : vector<16x16xi1>, vector<16x16xf32>
    %95 = arith.subf %62, %86 : vector<16x16xf32>
    %cst_67 = arith.constant 0.000000e+00 : f32
    %96 = vector.broadcast %cst_67 : f32 to vector<16x16xf32>
    %97 = arith.cmpf ogt, %95, %96 : vector<16x16xf32>
    %98 = arith.subf %62, %94 : vector<16x16xf32>
    %cst_68 = arith.constant 0.000000e+00 : f32
    %99 = vector.broadcast %cst_68 : f32 to vector<16x16xf32>
    %100 = arith.cmpf ogt, %98, %99 : vector<16x16xf32>
    %101 = arith.ori %97, %100 : vector<16x16xi1>
    %cst_69 = arith.constant 1.000000e+00 : f32
    %102 = vector.broadcast %cst_69 : f32 to vector<16x16xf32>
    %103 = arith.mulf %62, %102 : vector<16x16xf32>
    %cst_70 = arith.constant 1.000000e+01 : f32
    %104 = vector.broadcast %cst_70 : f32 to vector<16x16xf32>
    %105 = arith.select %101, %104, %103 : vector<16x16xi1>, vector<16x16xf32>
    %106 = arith.addf %56, %105 : vector<16x16xf32>
    %c0_71 = arith.constant 0 : index
    %c1_72 = arith.constant 1 : index
    %c0_73 = arith.constant 0 : index
    %c0_74 = arith.constant 0 : index
    %107 = vector.load %arg2[%c0_71, %c1_72, %c0_73, %c0_74] : memref<1x4x16x16xf32, #tpu.memory_space<vmem>>, vector<1x1x16x16xf32>
    %108 = vector.shape_cast %107 : vector<1x1x16x16xf32> to vector<16x16xf32>
    %c0_75 = arith.constant 0 : index
    %c1_76 = arith.constant 1 : index
    %c0_77 = arith.constant 0 : index
    %c0_78 = arith.constant 0 : index
    %109 = vector.load %arg3[%c0_75, %c1_76, %c0_77, %c0_78] : memref<1x4x16x16xi8, #tpu.memory_space<vmem>>, vector<1x1x16x16xi8>
    %110 = vector.shape_cast %109 : vector<1x1x16x16xi8> to vector<16x16xi8>
    %111 = arith.sitofp %110 : vector<16x16xi8> to vector<16x16xf32>
    %112 = arith.mulf %21, %45 : vector<16x16xf32>
    %113 = arith.mulf %111, %50 : vector<16x16xf32>
    %114 = arith.mulf %112, %113 : vector<16x16xf32>
    %cst_79 = arith.constant dense<0.000000e+00> : vector<16xf32>
    %115 = vector.multi_reduction <add>, %114, %cst_79 [0] : vector<16x16xf32> to vector<16xf32>
    %116 = vector.shape_cast %115 : vector<16xf32> to vector<1x16xf32>
    %117 = arith.mulf %112, %50 : vector<16x16xf32>
    %cst_80 = arith.constant dense<0.000000e+00> : vector<16xf32>
    %118 = vector.multi_reduction <add>, %117, %cst_80 [0] : vector<16x16xf32> to vector<16xf32>
    %119 = vector.shape_cast %118 : vector<16xf32> to vector<1x16xf32>
    %cst_81 = arith.constant dense<0.000000e+00> : vector<16xf32>
    %120 = vector.multi_reduction <add>, %113, %cst_81 [0] : vector<16x16xf32> to vector<16xf32>
    %121 = vector.shape_cast %120 : vector<16xf32> to vector<1x16xf32>
    %122 = arith.subf %108, %10 : vector<16x16xf32>
    %123 = arith.subf %122, %46 : vector<16x16xf32>
    %cst_82 = arith.constant -34.5387764 : f32
    %124 = vector.broadcast %cst_82 : f32 to vector<16x16xf32>
    %125 = arith.maximumf %123, %124 : vector<16x16xf32>
    %126 = arith.mulf %111, %125 : vector<16x16xf32>
    %127 = arith.addf %78, %126 : vector<16x16xf32>
    %c0_83 = arith.constant 0 : index
    %c0_84 = arith.constant 0 : index
    %c1_85 = arith.constant 1 : index
    %c0_86 = arith.constant 0 : index
    %128 = vector.load %arg4[%c0_83, %c0_84, %c1_85, %c0_86] : memref<1x1x4x16xf32, #tpu.memory_space<vmem>>, vector<1x1x1x16xf32>
    %129 = vector.shape_cast %128 : vector<1x1x1x16xf32> to vector<1x16xf32>
    %c1_i32_87 = arith.constant 1 : i32
    %130 = tpu.dynamic_rotate %111 by %c1_i32_87 dim 0 : vector<16x16xf32>, i32 -> vector<16x16xf32>
    %131 = vector.shape_cast %53 : vector<16x1xi1> to vector<16x1xi1>
    %132 = vector.broadcast %131 : vector<16x1xi1> to vector<16x16xi1>
    %133 = vector.shape_cast %129 : vector<1x16xf32> to vector<1x16xf32>
    %134 = vector.broadcast %133 : vector<1x16xf32> to vector<16x16xf32>
    %135 = arith.select %132, %134, %130 : vector<16x16xi1>, vector<16x16xf32>
    %c0_88 = arith.constant 0 : index
    %c0_89 = arith.constant 0 : index
    %c1_90 = arith.constant 1 : index
    %c0_91 = arith.constant 0 : index
    %136 = vector.load %arg5[%c0_88, %c0_89, %c1_90, %c0_91] : memref<1x1x4x16xf32, #tpu.memory_space<vmem>>, vector<1x1x1x16xf32>
    %137 = vector.shape_cast %136 : vector<1x1x1x16xf32> to vector<1x16xf32>
    %c15_i32_92 = arith.constant 15 : i32
    %138 = tpu.dynamic_rotate %111 by %c15_i32_92 dim 0 : vector<16x16xf32>, i32 -> vector<16x16xf32>
    %139 = vector.shape_cast %55 : vector<16x1xi1> to vector<16x1xi1>
    %140 = vector.broadcast %139 : vector<16x1xi1> to vector<16x16xi1>
    %141 = vector.shape_cast %137 : vector<1x16xf32> to vector<1x16xf32>
    %142 = vector.broadcast %141 : vector<1x16xf32> to vector<16x16xf32>
    %143 = arith.select %140, %142, %138 : vector<16x16xi1>, vector<16x16xf32>
    %144 = arith.subf %111, %135 : vector<16x16xf32>
    %cst_93 = arith.constant 0.000000e+00 : f32
    %145 = vector.broadcast %cst_93 : f32 to vector<16x16xf32>
    %146 = arith.cmpf ogt, %144, %145 : vector<16x16xf32>
    %147 = arith.subf %111, %143 : vector<16x16xf32>
    %cst_94 = arith.constant 0.000000e+00 : f32
    %148 = vector.broadcast %cst_94 : f32 to vector<16x16xf32>
    %149 = arith.cmpf ogt, %147, %148 : vector<16x16xf32>
    %150 = arith.ori %146, %149 : vector<16x16xi1>
    %cst_95 = arith.constant 5.000000e+00 : f32
    %151 = vector.broadcast %cst_95 : f32 to vector<16x16xf32>
    %152 = arith.mulf %111, %151 : vector<16x16xf32>
    %cst_96 = arith.constant 1.000000e+01 : f32
    %153 = vector.broadcast %cst_96 : f32 to vector<16x16xf32>
    %154 = arith.select %150, %153, %152 : vector<16x16xi1>, vector<16x16xf32>
    %155 = arith.addf %106, %154 : vector<16x16xf32>
    %c0_97 = arith.constant 0 : index
    %c2_98 = arith.constant 2 : index
    %c0_99 = arith.constant 0 : index
    %c0_100 = arith.constant 0 : index
    %156 = vector.load %arg2[%c0_97, %c2_98, %c0_99, %c0_100] : memref<1x4x16x16xf32, #tpu.memory_space<vmem>>, vector<1x1x16x16xf32>
    %157 = vector.shape_cast %156 : vector<1x1x16x16xf32> to vector<16x16xf32>
    %c0_101 = arith.constant 0 : index
    %c2_102 = arith.constant 2 : index
    %c0_103 = arith.constant 0 : index
    %c0_104 = arith.constant 0 : index
    %158 = vector.load %arg3[%c0_101, %c2_102, %c0_103, %c0_104] : memref<1x4x16x16xi8, #tpu.memory_space<vmem>>, vector<1x1x16x16xi8>
    %159 = vector.shape_cast %158 : vector<1x1x16x16xi8> to vector<16x16xi8>
    %160 = arith.sitofp %159 : vector<16x16xi8> to vector<16x16xf32>
    %161 = arith.mulf %30, %45 : vector<16x16xf32>
    %162 = arith.mulf %160, %50 : vector<16x16xf32>
    %163 = arith.mulf %161, %162 : vector<16x16xf32>
    %cst_105 = arith.constant dense<0.000000e+00> : vector<16xf32>
    %164 = vector.multi_reduction <add>, %163, %cst_105 [0] : vector<16x16xf32> to vector<16xf32>
    %165 = vector.shape_cast %164 : vector<16xf32> to vector<1x16xf32>
    %166 = arith.mulf %161, %50 : vector<16x16xf32>
    %cst_106 = arith.constant dense<0.000000e+00> : vector<16xf32>
    %167 = vector.multi_reduction <add>, %166, %cst_106 [0] : vector<16x16xf32> to vector<16xf32>
    %168 = vector.shape_cast %167 : vector<16xf32> to vector<1x16xf32>
    %cst_107 = arith.constant dense<0.000000e+00> : vector<16xf32>
    %169 = vector.multi_reduction <add>, %162, %cst_107 [0] : vector<16x16xf32> to vector<16xf32>
    %170 = vector.shape_cast %169 : vector<16xf32> to vector<1x16xf32>
    %171 = arith.subf %157, %10 : vector<16x16xf32>
    %172 = arith.subf %171, %46 : vector<16x16xf32>
    %cst_108 = arith.constant -34.5387764 : f32
    %173 = vector.broadcast %cst_108 : f32 to vector<16x16xf32>
    %174 = arith.maximumf %172, %173 : vector<16x16xf32>
    %175 = arith.mulf %160, %174 : vector<16x16xf32>
    %176 = arith.addf %127, %175 : vector<16x16xf32>
    %c0_109 = arith.constant 0 : index
    %c0_110 = arith.constant 0 : index
    %c2_111 = arith.constant 2 : index
    %c0_112 = arith.constant 0 : index
    %177 = vector.load %arg4[%c0_109, %c0_110, %c2_111, %c0_112] : memref<1x1x4x16xf32, #tpu.memory_space<vmem>>, vector<1x1x1x16xf32>
    %178 = vector.shape_cast %177 : vector<1x1x1x16xf32> to vector<1x16xf32>
    %c1_i32_113 = arith.constant 1 : i32
    %179 = tpu.dynamic_rotate %160 by %c1_i32_113 dim 0 : vector<16x16xf32>, i32 -> vector<16x16xf32>
    %180 = vector.shape_cast %53 : vector<16x1xi1> to vector<16x1xi1>
    %181 = vector.broadcast %180 : vector<16x1xi1> to vector<16x16xi1>
    %182 = vector.shape_cast %178 : vector<1x16xf32> to vector<1x16xf32>
    %183 = vector.broadcast %182 : vector<1x16xf32> to vector<16x16xf32>
    %184 = arith.select %181, %183, %179 : vector<16x16xi1>, vector<16x16xf32>
    %c0_114 = arith.constant 0 : index
    %c0_115 = arith.constant 0 : index
    %c2_116 = arith.constant 2 : index
    %c0_117 = arith.constant 0 : index
    %185 = vector.load %arg5[%c0_114, %c0_115, %c2_116, %c0_117] : memref<1x1x4x16xf32, #tpu.memory_space<vmem>>, vector<1x1x1x16xf32>
    %186 = vector.shape_cast %185 : vector<1x1x1x16xf32> to vector<1x16xf32>
    %c15_i32_118 = arith.constant 15 : i32
    %187 = tpu.dynamic_rotate %160 by %c15_i32_118 dim 0 : vector<16x16xf32>, i32 -> vector<16x16xf32>
    %188 = vector.shape_cast %55 : vector<16x1xi1> to vector<16x1xi1>
    %189 = vector.broadcast %188 : vector<16x1xi1> to vector<16x16xi1>
    %190 = vector.shape_cast %186 : vector<1x16xf32> to vector<1x16xf32>
    %191 = vector.broadcast %190 : vector<1x16xf32> to vector<16x16xf32>
    %192 = arith.select %189, %191, %187 : vector<16x16xi1>, vector<16x16xf32>
    %193 = arith.subf %160, %184 : vector<16x16xf32>
    %cst_119 = arith.constant 0.000000e+00 : f32
    %194 = vector.broadcast %cst_119 : f32 to vector<16x16xf32>
    %195 = arith.cmpf ogt, %193, %194 : vector<16x16xf32>
    %196 = arith.subf %160, %192 : vector<16x16xf32>
    %cst_120 = arith.constant 0.000000e+00 : f32
    %197 = vector.broadcast %cst_120 : f32 to vector<16x16xf32>
    %198 = arith.cmpf ogt, %196, %197 : vector<16x16xf32>
    %199 = arith.ori %195, %198 : vector<16x16xi1>
    %cst_121 = arith.constant 5.000000e+00 : f32
    %200 = vector.broadcast %cst_121 : f32 to vector<16x16xf32>
    %201 = arith.mulf %160, %200 : vector<16x16xf32>
    %cst_122 = arith.constant 1.000000e+01 : f32
    %202 = vector.broadcast %cst_122 : f32 to vector<16x16xf32>
    %203 = arith.select %199, %202, %201 : vector<16x16xi1>, vector<16x16xf32>
    %204 = arith.addf %155, %203 : vector<16x16xf32>
    %c0_123 = arith.constant 0 : index
    %c3_124 = arith.constant 3 : index
    %c0_125 = arith.constant 0 : index
    %c0_126 = arith.constant 0 : index
    %205 = vector.load %arg2[%c0_123, %c3_124, %c0_125, %c0_126] : memref<1x4x16x16xf32, #tpu.memory_space<vmem>>, vector<1x1x16x16xf32>
    %206 = vector.shape_cast %205 : vector<1x1x16x16xf32> to vector<16x16xf32>
    %c0_127 = arith.constant 0 : index
    %c3_128 = arith.constant 3 : index
    %c0_129 = arith.constant 0 : index
    %c0_130 = arith.constant 0 : index
    %207 = vector.load %arg3[%c0_127, %c3_128, %c0_129, %c0_130] : memref<1x4x16x16xi8, #tpu.memory_space<vmem>>, vector<1x1x16x16xi8>
    %208 = vector.shape_cast %207 : vector<1x1x16x16xi8> to vector<16x16xi8>
    %209 = arith.sitofp %208 : vector<16x16xi8> to vector<16x16xf32>
    %210 = arith.mulf %39, %45 : vector<16x16xf32>
    %211 = arith.mulf %209, %50 : vector<16x16xf32>
    %212 = arith.mulf %210, %211 : vector<16x16xf32>
    %cst_131 = arith.constant dense<0.000000e+00> : vector<16xf32>
    %213 = vector.multi_reduction <add>, %212, %cst_131 [0] : vector<16x16xf32> to vector<16xf32>
    %214 = vector.shape_cast %213 : vector<16xf32> to vector<1x16xf32>
    %215 = arith.mulf %210, %50 : vector<16x16xf32>
    %cst_132 = arith.constant dense<0.000000e+00> : vector<16xf32>
    %216 = vector.multi_reduction <add>, %215, %cst_132 [0] : vector<16x16xf32> to vector<16xf32>
    %217 = vector.shape_cast %216 : vector<16xf32> to vector<1x16xf32>
    %cst_133 = arith.constant dense<0.000000e+00> : vector<16xf32>
    %218 = vector.multi_reduction <add>, %211, %cst_133 [0] : vector<16x16xf32> to vector<16xf32>
    %219 = vector.shape_cast %218 : vector<16xf32> to vector<1x16xf32>
    %220 = arith.subf %206, %10 : vector<16x16xf32>
    %221 = arith.subf %220, %46 : vector<16x16xf32>
    %cst_134 = arith.constant -34.5387764 : f32
    %222 = vector.broadcast %cst_134 : f32 to vector<16x16xf32>
    %223 = arith.maximumf %221, %222 : vector<16x16xf32>
    %224 = arith.mulf %209, %223 : vector<16x16xf32>
    %225 = arith.addf %176, %224 : vector<16x16xf32>
    %c0_135 = arith.constant 0 : index
    %c0_136 = arith.constant 0 : index
    %c3_137 = arith.constant 3 : index
    %c0_138 = arith.constant 0 : index
    %226 = vector.load %arg4[%c0_135, %c0_136, %c3_137, %c0_138] : memref<1x1x4x16xf32, #tpu.memory_space<vmem>>, vector<1x1x1x16xf32>
    %227 = vector.shape_cast %226 : vector<1x1x1x16xf32> to vector<1x16xf32>
    %c1_i32_139 = arith.constant 1 : i32
    %228 = tpu.dynamic_rotate %209 by %c1_i32_139 dim 0 : vector<16x16xf32>, i32 -> vector<16x16xf32>
    %229 = vector.shape_cast %53 : vector<16x1xi1> to vector<16x1xi1>
    %230 = vector.broadcast %229 : vector<16x1xi1> to vector<16x16xi1>
    %231 = vector.shape_cast %227 : vector<1x16xf32> to vector<1x16xf32>
    %232 = vector.broadcast %231 : vector<1x16xf32> to vector<16x16xf32>
    %233 = arith.select %230, %232, %228 : vector<16x16xi1>, vector<16x16xf32>
    %c0_140 = arith.constant 0 : index
    %c0_141 = arith.constant 0 : index
    %c3_142 = arith.constant 3 : index
    %c0_143 = arith.constant 0 : index
    %234 = vector.load %arg5[%c0_140, %c0_141, %c3_142, %c0_143] : memref<1x1x4x16xf32, #tpu.memory_space<vmem>>, vector<1x1x1x16xf32>
    %235 = vector.shape_cast %234 : vector<1x1x1x16xf32> to vector<1x16xf32>
    %c15_i32_144 = arith.constant 15 : i32
    %236 = tpu.dynamic_rotate %209 by %c15_i32_144 dim 0 : vector<16x16xf32>, i32 -> vector<16x16xf32>
    %237 = vector.shape_cast %55 : vector<16x1xi1> to vector<16x1xi1>
    %238 = vector.broadcast %237 : vector<16x1xi1> to vector<16x16xi1>
    %239 = vector.shape_cast %235 : vector<1x16xf32> to vector<1x16xf32>
    %240 = vector.broadcast %239 : vector<1x16xf32> to vector<16x16xf32>
    %241 = arith.select %238, %240, %236 : vector<16x16xi1>, vector<16x16xf32>
    %242 = arith.subf %209, %233 : vector<16x16xf32>
    %cst_145 = arith.constant 0.000000e+00 : f32
    %243 = vector.broadcast %cst_145 : f32 to vector<16x16xf32>
    %244 = arith.cmpf ogt, %242, %243 : vector<16x16xf32>
    %245 = arith.subf %209, %241 : vector<16x16xf32>
    %cst_146 = arith.constant 0.000000e+00 : f32
    %246 = vector.broadcast %cst_146 : f32 to vector<16x16xf32>
    %247 = arith.cmpf ogt, %245, %246 : vector<16x16xf32>
    %248 = arith.ori %244, %247 : vector<16x16xi1>
    %cst_147 = arith.constant 1.000000e+00 : f32
    %249 = vector.broadcast %cst_147 : f32 to vector<16x16xf32>
    %250 = arith.mulf %209, %249 : vector<16x16xf32>
    %cst_148 = arith.constant 1.000000e+01 : f32
    %251 = vector.broadcast %cst_148 : f32 to vector<16x16xf32>
    %252 = arith.select %248, %251, %250 : vector<16x16xi1>, vector<16x16xf32>
    %253 = arith.addf %204, %252 : vector<16x16xf32>
    %cst_149 = arith.constant dense<0.000000e+00> : vector<16xf32>
    %254 = vector.multi_reduction <add>, %50, %cst_149 [0] : vector<16x16xf32> to vector<16xf32>
    %255 = vector.shape_cast %254 : vector<16xf32> to vector<1x16xf32>
    %256 = arith.mulf %253, %225 : vector<16x16xf32>
    %257 = arith.mulf %256, %50 : vector<16x16xf32>
    %cst_150 = arith.constant dense<0.000000e+00> : vector<16xf32>
    %258 = vector.multi_reduction <add>, %257, %cst_150 [0] : vector<16x16xf32> to vector<16xf32>
    %259 = vector.shape_cast %258 : vector<16xf32> to vector<1x16xf32>
    %cst_151 = arith.constant 0.000000e+00 : f32
    %260 = vector.broadcast %cst_151 : f32 to vector<2x16xf32>
    %261 = tpu.concatenate %67, %116, %165, %214, %70, %119, %168, %217, %72, %121, %170, %219, %255, %259, %260 in 0 : vector<1x16xf32>, vector<1x16xf32>, vector<1x16xf32>, vector<1x16xf32>, vector<1x16xf32>, vector<1x16xf32>, vector<1x16xf32>, vector<1x16xf32>, vector<1x16xf32>, vector<1x16xf32>, vector<1x16xf32>, vector<1x16xf32>, vector<1x16xf32>, vector<1x16xf32>, vector<2x16xf32> -> vector<16x16xf32>
    %c0_152 = arith.constant 0 : index
    %c0_153 = arith.constant 0 : index
    %c0_154 = arith.constant 0 : index
    %c0_155 = arith.constant 0 : index
    %262 = vector.load %arg6[%c0_152, %c0_153, %c0_154, %c0_155] : memref<1x1x16x16xf32, #tpu.memory_space<vmem>>, vector<1x1x16x16xf32>
    %263 = vector.shape_cast %262 : vector<1x1x16x16xf32> to vector<16x16xf32>
    %264 = vector.shape_cast %261 : vector<16x16xf32> to vector<1x1x16x16xf32>
    tpu.vector_store %arg6[%c0_152, %c0_153, %c0_154, %c0_155], %264 {strides = array<i32>} : memref<1x1x16x16xf32, #tpu.memory_space<vmem>>, vector<1x1x16x16xf32>,
    return
  }
  func.func @transform_0(%arg0: i32, %arg1: i32) -> (i32, i32, i32, i32) {
    %c0_i32 = arith.constant 0 : i32
    %c0_i32_0 = arith.constant 0 : i32
    %c0_i32_1 = arith.constant 0 : i32
    return %arg0, %c0_i32, %arg1, %c0_i32_0 : i32, i32, i32, i32
  }
  func.func @transform_1(%arg0: i32, %arg1: i32) -> (i32, i32, i32, i32) {
    %c0_i32 = arith.constant 0 : i32
    %c0_i32_0 = arith.constant 0 : i32
    %c0_i32_1 = arith.constant 0 : i32
    return %arg0, %c0_i32, %arg1, %c0_i32_0 : i32, i32, i32, i32
  }
  func.func @transform_2(%arg0: i32, %arg1: i32) -> (i32, i32, i32, i32) {
    %c0_i32 = arith.constant 0 : i32
    %c0_i32_0 = arith.constant 0 : i32
    %c0_i32_1 = arith.constant 0 : i32
    return %arg0, %arg1, %c0_i32, %c0_i32_0 : i32, i32, i32, i32
  }
  func.func @transform_3(%arg0: i32, %arg1: i32) -> (i32, i32, i32, i32) {
    %c0_i32 = arith.constant 0 : i32
    %c0_i32_0 = arith.constant 0 : i32
    %c0_i32_1 = arith.constant 0 : i32
    return %arg0, %arg1, %c0_i32, %c0_i32_0 : i32, i32, i32, i32
  }
  func.func @transform_4(%arg0: i32, %arg1: i32) -> (i32, i32, i32, i32) {
    %c0_i32 = arith.constant 0 : i32
    %c0_i32_0 = arith.constant 0 : i32
    %c0_i32_1 = arith.constant 0 : i32
    return %arg0, %arg1, %c0_i32, %c0_i32_0 : i32, i32, i32, i32
  }
}

</mosaic_0001>

<llo_original>
// kernel: tpu_custom_call.1
$region0: #{tpu_custom_call.1}
  #allocation0 [shape = 'u32[]', space=smem, size = 0x4, offset = 0x4, fixed_abs, tag = 'smem constant byte address 0x4 - core index']
  #allocation1 [shape = 'u32[144,128]{1,0:T(1,128)}', space=vmem, size = 0x12000, scoped, tag = 'internal scratch']
  %s0 = inlined_call_operand.hbm [shape: f32[2,4,16,16], index: 0, kind: input, shape index: {}]
  %s1 = inlined_call_operand.hbm [shape: s8[2,4,16,16], index: 1, kind: input, shape index: {}]
  %s2 = inlined_call_operand.hbm [shape: f32[2,1,4,16], index: 2, kind: input, shape index: {}]
  %s3 = inlined_call_operand.hbm [shape: f32[2,1,4,16], index: 3, kind: input, shape index: {}]
  %s4 = inlined_call_operand.hbm [shape: f32[2,1,16,16], index: 4, kind: output, shape index: {}]
  %s5 = sld [smem:[#allocation0]]
  $region65: #{tpu_custom_call.1} parent=0
    _
  %s7 = ssub.s32 1, %s5
  %s8 = scalar_select 0, %s7, %s5
  $region1: #{tpu_custom_call.1} parent=0
    #allocation2 [shape = 'u8[65536]{0}', space=vmem, size = 0x10000, scoped, tag = 'input window, operand 0']
    #allocation3 [shape = 's32[2]{0}', space=sflag, size = 0x8, scoped, tag = 'scoped memory for tpu_custom_call.1']
    #allocation4 [shape = 's32[2]{0}', space=sflag, size = 0x8, scoped, tag = 'scoped memory for tpu_custom_call.1']
    #allocation5 [shape = 'u8[16384]{0}', space=vmem, size = 0x4000, scoped, tag = 'input window, operand 1']
    #allocation6 [shape = 's32[2]{0}', space=sflag, size = 0x8, scoped, tag = 'scoped memory for tpu_custom_call.1']
    #allocation7 [shape = 'u8[4096]{0}', space=vmem, size = 0x1000, scoped, tag = 'input window, operand 2']
    #allocation8 [shape = 'u8[4096]{0}', space=vmem, size = 0x1000, scoped, tag = 'input window, operand 3']
    #allocation9 [shape = 's32[2]{0}', space=sflag, size = 0x8, scoped, tag = 'scoped memory for tpu_custom_call.1']
    #allocation10 [shape = 'u8[16384]{0}', space=vmem, size = 0x4000, scoped, tag = 'output window, operand 0']
    %9 = vsyncpa [#allocation3], 0
    %s10 = scalar_lea.sflag [#allocation3], 1
    %11 = vsyncpa %s10, 0
    %12 = vsyncpa [#allocation6], 0
    %s13 = scalar_lea.sflag [#allocation6], 1
    %14 = vsyncpa %s13, 0
    %15 = vsyncpa [#allocation9], 0
    %s16 = scalar_lea.sflag [#allocation9], 1
    %17 = vsyncpa %s16, 0
    %18 = vsyncpa [#allocation4], 0
    %s19 = scalar_lea.sflag [#allocation4], 1
    %20 = vsyncpa %s19, 0
    loop: start=0, step=1, limit=4
    $region2: #{tpu_custom_call.1} parent=1 // loop_pre_header
      _
    $region3: #{tpu_custom_call.1} parent=1 // loop_header
      %s22 = sphi 0, %s26
      %p23 = scmp.ge.s32.totalorder %s22, 4
      %s29 = sphi 0, %s41
      %s30 = sphi 0, %s37
      %s31 = sphi 0, %s29
      %s32 = sphi 0, %s30
      %s33 = sphi 0, %s31
      %s34 = sphi 0, %s32
      %s46 = sphi 0, %s48
      %s49 = sphi 0, %s46
      %s50 = sphi 0, %s49
      %s66 = sphi 0, %s50
      %s74 = sphi 0, %s76
      %s77 = sphi 0, %s74
      %s78 = sphi 0, %s77
      %s94 = sphi 0, %s78
      %s102 = sphi 0, %s104
      %s105 = sphi 0, %s102
      %s106 = sphi 0, %s105
      %s122 = sphi 0, %s106
      %s130 = sphi 0, %s132
      %s133 = sphi 0, %s130
      %s134 = sphi 0, %s133
      %s150 = sphi 0, %s134
      %s158 = sphi 0, %s160
      %s161 = sphi 0, %s158
      %s162 = sphi 0, %s161
      %s178 = sphi 0, %s162
    $region4: #{tpu_custom_call.1} parent=1 // loop_header_branch
      %25 = sbr.rel (%p23) target = $region8
    $region5: #{tpu_custom_call.1} parent=1 // loop_body
      %s27 = ssub.s32 %s22, 1
      %s28 = ssub.s32 %s22, 2
      %s35 = sadd.s32 1, %s30
      %p36 = scmp.ge.s32.totalorder %s35, 1
      %s37 = scalar_select %p36, 0, %s35
      %s38 = sadd.s32 1, %s29
      %s39 = scalar_select %p36, %s38, %s29
      %p40 = scmp.ge.s32.totalorder %s39, 2
      %s41 = scalar_select %p40, 0, %s39
      %s42 = ssub.s32 %s29, %s41
      %s43 = ssub.s32 %s30, %s37
      %s44 = sor.u32 %s42, %s43
      %p45 = scmp.eq.s32.totalorder %s44, 0
      %s47 = sadd.s32 %s46, 1
      %s48 = scalar_select %p45, %s46, %s47
      %p51 = pneg %p45
      %p52 = scmp.eq.s32.totalorder %s22, 1
      %p53 = por %p51, %p52
      %p54 = scmp.ne.s32.totalorder %s46, %s49
      %p55 = scmp.eq.s32.totalorder %s22, 0
      %p56 = por %p54, %p55
      %p57 = scmp.ne.s32.totalorder %s46, %s49
      %p58 = scmp.eq.s32.totalorder %s27, 1
      %p59 = por %p57, %p58
      %p60 = scmp.ne.s32.totalorder %s49, %s50
      %p61 = scmp.eq.s32.totalorder %s27, 0
      %p62 = por %p60, %p61
      %p63 = scmp.ne.s32.totalorder %s49, %s50
      %p64 = scmp.eq.s32.totalorder %s28, 1
      %p65 = por %p63, %p64
      %p67 = scmp.ne.s32.totalorder %s50, %s66
      %p68 = scmp.eq.s32.totalorder %s28, 0
      %p69 = por %p67, %p68
      %s70 = ssub.s32 %s29, %s41
      %s71 = ssub.s32 %s30, %s37
      %s72 = sor.u32 %s70, %s71
      %p73 = scmp.eq.s32.totalorder %s72, 0
      %s75 = sadd.s32 %s74, 1
      %s76 = scalar_select %p73, %s74, %s75
      %p79 = pneg %p73
      %p80 = scmp.eq.s32.totalorder %s22, 1
      %p81 = por %p79, %p80
      %p82 = scmp.ne.s32.totalorder %s74, %s77
      %p83 = scmp.eq.s32.totalorder %s22, 0
      %p84 = por %p82, %p83
      %p85 = scmp.ne.s32.totalorder %s74, %s77
      %p86 = scmp.eq.s32.totalorder %s27, 1
      %p87 = por %p85, %p86
      %p88 = scmp.ne.s32.totalorder %s77, %s78
      %p89 = scmp.eq.s32.totalorder %s27, 0
      %p90 = por %p88, %p89
      %p91 = scmp.ne.s32.totalorder %s77, %s78
      %p92 = scmp.eq.s32.totalorder %s28, 1
      %p93 = por %p91, %p92
      %p95 = scmp.ne.s32.totalorder %s78, %s94
      %p96 = scmp.eq.s32.totalorder %s28, 0
      %p97 = por %p95, %p96
      %s98 = ssub.s32 %s29, %s41
      %s99 = ssub.s32 %s30, %s37
      %s100 = sor.u32 %s98, %s99
      %p101 = scmp.eq.s32.totalorder %s100, 0
      %s103 = sadd.s32 %s102, 1
      %s104 = scalar_select %p101, %s102, %s103
      %p107 = pneg %p101
      %p108 = scmp.eq.s32.totalorder %s22, 1
      %p109 = por %p107, %p108
      %p110 = scmp.ne.s32.totalorder %s102, %s105
      %p111 = scmp.eq.s32.totalorder %s22, 0
      %p112 = por %p110, %p111
      %p113 = scmp.ne.s32.totalorder %s102, %s105
      %p114 = scmp.eq.s32.totalorder %s27, 1
      %p115 = por %p113, %p114
      %p116 = scmp.ne.s32.totalorder %s105, %s106
      %p117 = scmp.eq.s32.totalorder %s27, 0
      %p118 = por %p116, %p117
      %p119 = scmp.ne.s32.totalorder %s105, %s106
      %p120 = scmp.eq.s32.totalorder %s28, 1
      %p121 = por %p119, %p120
      %p123 = scmp.ne.s32.totalorder %s106, %s122
      %p124 = scmp.eq.s32.totalorder %s28, 0
      %p125 = por %p123, %p124
      %s126 = ssub.s32 %s29, %s41
      %s127 = ssub.s32 %s30, %s37
      %s128 = sor.u32 %s126, %s127
      %p129 = scmp.eq.s32.totalorder %s128, 0
      %s131 = sadd.s32 %s130, 1
      %s132 = scalar_select %p129, %s130, %s131
      %p135 = pneg %p129
      %p136 = scmp.eq.s32.totalorder %s22, 1
      %p137 = por %p135, %p136
      %p138 = scmp.ne.s32.totalorder %s130, %s133
      %p139 = scmp.eq.s32.totalorder %s22, 0
      %p140 = por %p138, %p139
      %p141 = scmp.ne.s32.totalorder %s130, %s133
      %p142 = scmp.eq.s32.totalorder %s27, 1
      %p143 = por %p141, %p142
      %p144 = scmp.ne.s32.totalorder %s133, %s134
      %p145 = scmp.eq.s32.totalorder %s27, 0
      %p146 = por %p144, %p145
      %p147 = scmp.ne.s32.totalorder %s133, %s134
      %p148 = scmp.eq.s32.totalorder %s28, 1
      %p149 = por %p147, %p148
      %p151 = scmp.ne.s32.totalorder %s134, %s150
      %p152 = scmp.eq.s32.totalorder %s28, 0
      %p153 = por %p151, %p152
      %s154 = ssub.s32 %s29, %s41
      %s155 = ssub.s32 %s30, %s37
      %s156 = sor.u32 %s154, %s155
      %p157 = scmp.eq.s32.totalorder %s156, 0
      %s159 = sadd.s32 %s158, 1
      %s160 = scalar_select %p157, %s158, %s159
      %p163 = pneg %p157
      %p164 = scmp.eq.s32.totalorder %s22, 1
      %p165 = por %p163, %p164
      %p166 = scmp.ne.s32.totalorder %s158, %s161
      %p167 = scmp.eq.s32.totalorder %s22, 0
      %p168 = por %p166, %p167
      %p169 = scmp.ne.s32.totalorder %s158, %s161
      %p170 = scmp.eq.s32.totalorder %s27, 1
      %p171 = por %p169, %p170
      %p172 = scmp.ne.s32.totalorder %s161, %s162
      %p173 = scmp.eq.s32.totalorder %s27, 0
      %p174 = por %p172, %p173
      %p175 = scmp.ne.s32.totalorder %s161, %s162
      %p176 = scmp.eq.s32.totalorder %s28, 1
      %p177 = por %p175, %p176
      %p179 = scmp.ne.s32.totalorder %s162, %s178
      %p180 = scmp.eq.s32.totalorder %s28, 0
      %p181 = por %p179, %p180
      %p182 = scmp.le.s32.totalorder 1, %s22
      %p183 = scmp.lt.s32.totalorder %s22, 3
      %p184 = pnand %p182, %p183
      %p185 = pneg %p184
      // Predicated region
      $region9: #{tpu_custom_call.1} parent=5 // pred_check
        _
      $region10: #{tpu_custom_call.1} parent=5 // pred_check_branch
        %187 = sbr.rel (%p184) target = $region12
      $region11: #{tpu_custom_call.1} parent=5 // pred_region
        %s188 = ssub.s32 %s22, 1
      $region12: #{tpu_custom_call.1} parent=5 // pred_fallthru
        _
      %p189 = scmp.lt.s32.totalorder %s22, 2
      // Predicated region
      $region13: #{tpu_custom_call.1} parent=5 // pred_check
        %p190 = pneg %p189
      $region14: #{tpu_custom_call.1} parent=5 // pred_check_branch
        %192 = sbr.rel (%p190) target = $region16
      $region15: #{tpu_custom_call.1} parent=5 // pred_region
        // Predicated region
        $region17: #{tpu_custom_call.1} parent=15 // pred_check
          %p193 = pneg %p56
        $region18: #{tpu_custom_call.1} parent=15 // pred_check_branch
          %195 = sbr.rel (%p193) target = $region20
        $region19: #{tpu_custom_call.1} parent=15 // pred_region
          %s196 = sand.u32 %s46, 1
          %s197 = scalar_lea.sflag [#allocation3], %s196
          %s198 = sand.u32 %s46, 1
          %s199 = smul.addr %s198, 64
          %s200 = scalar_lea.vmem [#allocation2], %s199
          %s201 = smul.u32 2, %s30
          %s203 = ssub.s32 1024, 1024
          %204 = vsyncadd %s197, %s203
          %s205 = smul.addr %s29, 8
          %s206 = sadd.s32 %s201, %s205
          %s207 = smul.addr %s206, 128
          %s208 = scalar_lea.hbm %s0, %s207
          %s209 = sshll.u32 %s200, 4
          %s210 = int_to_ptr.vmem [resolvable:$true] %s209
          %215 = dma.hbm_to_vmem [thread:$0]  %s208, 1024, %s210, %s197, 128, 128, 8
        $region20: #{tpu_custom_call.1} parent=15 // pred_fallthru
          _
        // Predicated region
        $region21: #{tpu_custom_call.1} parent=15 // pred_check
          %p216 = pneg %p84
        $region22: #{tpu_custom_call.1} parent=15 // pred_check_branch
          %218 = sbr.rel (%p216) target = $region24
        $region23: #{tpu_custom_call.1} parent=15 // pred_region
          %s219 = sand.u32 %s22, 1
          %s220 = scalar_lea.sflag [#allocation6], %s219
          %s221 = sand.u32 %s74, 1
          %s222 = smul.addr %s221, 16
          %s223 = scalar_lea.vmem [#allocation5], %s222
          %s224 = smul.u32 2, %s30
          %s226 = ssub.s32 256, 256
          %227 = vsyncadd %s220, %s226
          %s228 = smul.addr %s29, 8
          %s229 = sadd.s32 %s224, %s228
          %s230 = smul.addr %s229, 32
          %s231 = scalar_lea.hbm %s1, %s230
          %s232 = sshll.u32 %s223, 4
          %s233 = int_to_ptr.vmem [resolvable:$true] %s232
          %238 = dma.hbm_to_vmem [thread:$0]  %s231, 256, %s233, %s220, 32, 32, 2
        $region24: #{tpu_custom_call.1} parent=15 // pred_fallthru
          _
        // Predicated region
        $region25: #{tpu_custom_call.1} parent=15 // pred_check
          %p239 = pneg %p112
        $region26: #{tpu_custom_call.1} parent=15 // pred_check_branch
          %241 = sbr.rel (%p239) target = $region28
        $region27: #{tpu_custom_call.1} parent=15 // pred_region
          %s242 = sand.u32 %s22, 1
          %s243 = scalar_lea.sflag [#allocation6], %s242
          %s244 = sand.u32 %s102, 1
          %s245 = smul.addr %s244, 4
          %s246 = scalar_lea.vmem [#allocation7], %s245
          %s248 = ssub.s32 64, 64
          %249 = vsyncadd %s243, %s248
          %s250 = sadd.s32 %s30, %s29
          %s251 = smul.addr %s250, 64
          %s252 = scalar_lea.hbm %s2, %s251
          %s254 = sshll.u32 %s246, 4
          %s255 = int_to_ptr.vmem [resolvable:$true] %s254
          %257 = dma.hbm_to_vmem [thread:$0]  %s252, 64, %s255, %s243
        $region28: #{tpu_custom_call.1} parent=15 // pred_fallthru
          _
        // Predicated region
        $region29: #{tpu_custom_call.1} parent=15 // pred_check
          %p258 = pneg %p140
        $region30: #{tpu_custom_call.1} parent=15 // pred_check_branch
          %260 = sbr.rel (%p258) target = $region32
        $region31: #{tpu_custom_call.1} parent=15 // pred_region
          %s261 = sand.u32 %s130, 1
          %s262 = scalar_lea.sflag [#allocation9], %s261
          %s263 = sand.u32 %s130, 1
          %s264 = smul.addr %s263, 4
          %s265 = scalar_lea.vmem [#allocation8], %s264
          %s267 = ssub.s32 64, 64
          %268 = vsyncadd %s262, %s267
          %s269 = sadd.s32 %s30, %s29
          %s270 = smul.addr %s269, 64
          %s271 = scalar_lea.hbm %s3, %s270
          %s273 = sshll.u32 %s265, 4
          %s274 = int_to_ptr.vmem [resolvable:$true] %s273
          %276 = dma.hbm_to_vmem [thread:$0]  %s271, 64, %s274, %s262
        $region32: #{tpu_custom_call.1} parent=15 // pred_fallthru
          _
      $region16: #{tpu_custom_call.1} parent=5 // pred_fallthru
        _
      %p277 = scmp.le.s32.totalorder 1, %s22
      %p278 = scmp.lt.s32.totalorder %s22, 3
      %p279 = pnand %p277, %p278
      %p280 = pneg %p279
      // Predicated region
      $region33: #{tpu_custom_call.1} parent=5 // pred_check
        _
      $region34: #{tpu_custom_call.1} parent=5 // pred_check_branch
        %282 = sbr.rel (%p279) target = $region36
      $region35: #{tpu_custom_call.1} parent=5 // pred_region
        %s283 = ssub.s32 %s22, 1
        %s284 = sand.u32 %s49, 1
        %s285 = scalar_lea.sflag [#allocation3], %s284
        %s286 = sand.u32 %s49, 1
        %s287 = smul.addr %s286, 64
        %s288 = scalar_lea.vmem [#allocation2], %s287
        // Predicated region
        $region37: #{tpu_custom_call.1} parent=35 // pred_check
          %p289 = pneg %p62
        $region38: #{tpu_custom_call.1} parent=35 // pred_check_branch
          %291 = sbr.rel (%p289) target = $region40
        $region39: #{tpu_custom_call.1} parent=35 // pred_region
          %292 = dma.done %s285, 1024
        $region40: #{tpu_custom_call.1} parent=35 // pred_fallthru
          _
        %s293 = sand.u32 %s27, 1
        %s294 = scalar_lea.sflag [#allocation6], %s293
        %s295 = sand.u32 %s77, 1
        %s296 = smul.addr %s295, 16
        %s297 = scalar_lea.vmem [#allocation5], %s296
        // Predicated region
        $region41: #{tpu_custom_call.1} parent=35 // pred_check
          %p298 = pneg %p90
        $region42: #{tpu_custom_call.1} parent=35 // pred_check_branch
          %300 = sbr.rel (%p298) target = $region44
        $region43: #{tpu_custom_call.1} parent=35 // pred_region
          %301 = dma.done %s294, 256
        $region44: #{tpu_custom_call.1} parent=35 // pred_fallthru
          _
        %s302 = sand.u32 %s27, 1
        %s303 = scalar_lea.sflag [#allocation6], %s302
        %s304 = sand.u32 %s105, 1
        %s305 = smul.addr %s304, 4
        %s306 = scalar_lea.vmem [#allocation7], %s305
        // Predicated region
        $region45: #{tpu_custom_call.1} parent=35 // pred_check
          %p307 = pneg %p118
        $region46: #{tpu_custom_call.1} parent=35 // pred_check_branch
          %309 = sbr.rel (%p307) target = $region48
        $region47: #{tpu_custom_call.1} parent=35 // pred_region
          %310 = dma.done %s303, 64
        $region48: #{tpu_custom_call.1} parent=35 // pred_fallthru
          _
        %s311 = sand.u32 %s133, 1
        %s312 = scalar_lea.sflag [#allocation9], %s311
        %s313 = sand.u32 %s133, 1
        %s314 = smul.addr %s313, 4
        %s315 = scalar_lea.vmem [#allocation8], %s314
        // Predicated region
        $region49: #{tpu_custom_call.1} parent=35 // pred_check
          %p316 = pneg %p146
        $region50: #{tpu_custom_call.1} parent=35 // pred_check_branch
          %318 = sbr.rel (%p316) target = $region52
        $region51: #{tpu_custom_call.1} parent=35 // pred_region
          %319 = dma.done %s312, 64
        $region52: #{tpu_custom_call.1} parent=35 // pred_fallthru
          _
        %s320 = sand.u32 %s49, 1
        %s321 = scalar_lea.sflag [#allocation3], %s320
        %s322 = sand.u32 %s49, 1
        %s323 = smul.addr %s322, 64
        %s324 = scalar_lea.vmem [#allocation2], %s323
        %p325 = pneg %p62
        %p326 = pneg %p59
        %s327 = sand.u32 %s27, 1
        %s328 = scalar_lea.sflag [#allocation6], %s327
        %s329 = sand.u32 %s77, 1
        %s330 = smul.addr %s329, 16
        %s331 = scalar_lea.vmem [#allocation5], %s330
        %p332 = pneg %p90
        %p333 = pneg %p87
        %s334 = sand.u32 %s27, 1
        %s335 = scalar_lea.sflag [#allocation6], %s334
        %s336 = sand.u32 %s105, 1
        %s337 = smul.addr %s336, 4
        %s338 = scalar_lea.vmem [#allocation7], %s337
        %p339 = pneg %p118
        %p340 = pneg %p115
        %s341 = sand.u32 %s133, 1
        %s342 = scalar_lea.sflag [#allocation9], %s341
        %s343 = sand.u32 %s133, 1
        %s344 = smul.addr %s343, 4
        %s345 = scalar_lea.vmem [#allocation8], %s344
        %p346 = pneg %p146
        %p347 = pneg %p143
        %p348 = pneg %p174
        %p349 = pneg %p171
        %s350 = sand.u32 %s161, 1
        %s351 = scalar_lea.sflag [#allocation4], %s350
        %s352 = sand.u32 %s161, 1
        %s353 = smul.addr %s352, 16
        %s354 = scalar_lea.vmem [#allocation10], %s353
        %s355 = smul.u32 2, %s32
        %s356 = smul.u32 2, %s32
        %v357 = vld [vmem:[%s288] sm:$0xff]
        %v358 = vld [vmem:[%s288 + $0x8] sm:$0xff]
        %s359 = scalar_lea.vmem %s288, 16 [#allocation2]
        %v360 = vld [vmem:[%s359] sm:$0xff]
        %v361 = vld [vmem:[%s359 + $0x8] sm:$0xff]
        %v362 = vmax.f32 %v357, %v360
        %v363 = vmax.f32 %v358, %v361
        %s364 = scalar_lea.vmem %s288, 32 [#allocation2]
        %v365 = vld [vmem:[%s364] sm:$0xff]
        %v366 = vld [vmem:[%s364 + $0x8] sm:$0xff]
        %v367 = vmax.f32 %v362, %v365
        %v368 = vmax.f32 %v363, %v366
        %s369 = scalar_lea.vmem %s288, 48 [#allocation2]
        %v370 = vld [vmem:[%s369] sm:$0xff]
        %v371 = vld [vmem:[%s369 + $0x8] sm:$0xff]
        %v372 = vmax.f32 %v367, %v370
        %v373 = vmax.f32 %v368, %v371
        %v374 = vsub.f32 %v357, %v372
        %v375 = vsub.f32 %v358, %v373
        %v376 = vmul.f32 %v374, 1.442695
        %v377 = vpow.pop %v376
        %v378 = vmul.f32 %v375, 1.442695
        %v379 = vpow.pop %v378
        %v380 = vld [vmem:[%s297] sm:$0x3]
        %v381 = vld [vmem:[%s297 + $0x2] sm:$0x3]
        %v382 = vunpack.c.0.s8 %v380
        %v383 = vunpack.c.0.s8 %v381
        %v384 = vcvt.s32.f32 %v382
        %v385 = vcvt.s32.f32 %v383
        %v386 = vsub.f32 %v360, %v372
        %v387 = vsub.f32 %v361, %v373
        %v388 = vmul.f32 %v386, 1.442695
        %v389 = vpow.pop %v388
        %v390 = vmul.f32 %v387, 1.442695
        %v391 = vpow.pop %v390
        %v392 = vadd.f32 %v377, %v389
        %v393 = vadd.f32 %v379, %v391
        %s394 = scalar_lea.vmem %s297, 4 [#allocation5]
        %v395 = vld [vmem:[%s394] sm:$0x3]
        %v396 = vld [vmem:[%s394 + $0x2] sm:$0x3]
        %v397 = vunpack.c.0.s8 %v395
        %v398 = vunpack.c.0.s8 %v396
        %v399 = vcvt.s32.f32 %v397
        %v400 = vcvt.s32.f32 %v398
        %v401 = vadd.f32 %v384, %v399
        %v402 = vadd.f32 %v385, %v400
        %v403 = vsub.f32 %v365, %v372
        %v404 = vsub.f32 %v366, %v373
        %v405 = vmul.f32 %v403, 1.442695
        %v406 = vpow.pop %v405
        %v407 = vmul.f32 %v404, 1.442695
        %v408 = vpow.pop %v407
        %v409 = vadd.f32 %v392, %v406
        %v410 = vadd.f32 %v393, %v408
        %s411 = scalar_lea.vmem %s297, 8 [#allocation5]
        %v412 = vld [vmem:[%s411] sm:$0x3]
        %v413 = vld [vmem:[%s411 + $0x2] sm:$0x3]
        %v414 = vunpack.c.0.s8 %v412
        %v415 = vunpack.c.0.s8 %v413
        %v416 = vcvt.s32.f32 %v414
        %v417 = vcvt.s32.f32 %v415
        %v418 = vadd.f32 %v401, %v416
        %v419 = vadd.f32 %v402, %v417
        %v420 = vsub.f32 %v370, %v372
        %v421 = vsub.f32 %v371, %v373
        %v422 = vmul.f32 %v420, 1.442695
        %v423 = vpow.pop %v422
        %v424 = vmul.f32 %v421, 1.442695
        %v425 = vpow.pop %v424
        %v426 = vadd.f32 %v409, %v423
        %v427 = vadd.f32 %v410, %v425
        %s428 = scalar_lea.vmem %s297, 12 [#allocation5]
        %v429 = vld [vmem:[%s428] sm:$0x3]
        %v430 = vld [vmem:[%s428 + $0x2] sm:$0x3]
        %v431 = vunpack.c.0.s8 %v429
        %v432 = vunpack.c.0.s8 %v430
        %v433 = vcvt.s32.f32 %v431
        %v434 = vcvt.s32.f32 %v432
        %v435 = vadd.f32 %v418, %v433
        %v436 = vadd.f32 %v419, %v434
        %v437 = vrcp.pop %v426
        %v438 = vrcp.pop %v427
        %v439 = vlog2.pop %v426
        %v440 = vmul.f32 %v439, 0.6931472
        %v441 = vlog2.pop %v427
        %v442 = vmul.f32 %v441, 0.6931472
        %vm443 = vcmp.ne.f32.partialorder %v435, 0.0
        %vm444 = vcmp.ne.f32.partialorder %v436, 0.0
        %v445 = vsel %vm443, 1, 0
        %v446 = vsel %vm444, 1, 0
        %v447 = vcvt.s32.f32 %v445
        %v448 = vcvt.s32.f32 %v446
        %v449 = vlaneseq
        %v450 = vshrl.u32 %v449, 7
        %v451 = vadd.s32 %v450, 8
        %vm452 = vcmp.eq.s32.totalorder %v450, 0
        %vm453 = vcmp.eq.s32.totalorder %v451, 0
        %vm454 = vcmp.eq.s32.totalorder %v450, 15
        %vm455 = vcmp.eq.s32.totalorder %v451, 15
        %v456 = vmul.f32 %v377, %v437
        %v457 = vmul.f32 %v379, %v438
        %v458 = vmul.f32 %v384, %v447
        %v459 = vmul.f32 %v385, %v448
        %v460 = vmul.f32 %v456, %v458
        %v461 = vmul.f32 %v457, %v459
        %vm462 = vcmask 130048
        %v463 = vsel %vm462, %v460, 0.0
        %v464 = vsel %vm462, %v461, 0.0
        %v465 = vadd.f32 %v463, %v464
        %v466 = vrot.slane %v465, 4
        %v467 = vadd.f32 %v465, %v466
        %v468 = vrot.slane %v467, 2
        %v469 = vadd.f32 %v467, %v468
        %v470 = vrot.slane %v469, 1
        %v471 = vadd.f32 %v469, %v470
        %v472 = vmul.f32 %v456, %v447
        %v473 = vmul.f32 %v457, %v448
        %v474 = vsel %vm462, %v472, 0.0
        %v475 = vsel %vm462, %v473, 0.0
        %v476 = vadd.f32 %v474, %v475
        %v477 = vrot.slane %v476, 4
        %v478 = vadd.f32 %v476, %v477
        %v479 = vrot.slane %v478, 2
        %v480 = vadd.f32 %v478, %v479
        %v481 = vrot.slane %v480, 1
        %v482 = vadd.f32 %v480, %v481
        %v483 = vsel %vm462, %v458, 0.0
        %v484 = vsel %vm462, %v459, 0.0
        %v485 = vadd.f32 %v483, %v484
        %v486 = vrot.slane %v485, 4
        %v487 = vadd.f32 %v485, %v486
        %v488 = vrot.slane %v487, 2
        %v489 = vadd.f32 %v487, %v488
        %v490 = vrot.slane %v489, 1
        %v491 = vadd.f32 %v489, %v490
        %v492 = vsub.f32 %v374, %v440
        %v493 = vsub.f32 %v375, %v442
        %v494 = vmax.f32 %v492, -34.538776
        %v495 = vmax.f32 %v493, -34.538776
        %v496 = vmul.f32 %v384, %v494
        %v497 = vmul.f32 %v385, %v495
        %v498 = vadd.f32 %v496, 0.0
        %v499 = vadd.f32 %v497, 0.0
        %v500 = vld [vmem:[%s306] sm:$0x1]
        %v501 = vrot.slane %v384, 7
        %v502 = vrot.slane %v385, 7
        %vm503 = vcmp.lt.s32.totalorder %v450, 1
        %v504 = vsel %vm503, %v501, %v502
        %v505 = vsel %vm503, %v502, %v501
        %v506 = vsel %vm452, 1, 0
        %v507 = vsel %vm453, 1, 0
        %vm508 = vcmp.eq.s32.totalorder %v506, 1
        %vm509 = vcmp.eq.s32.totalorder %v507, 1
        %v510 = vlaneseq
        %v511 = vshrl.u32 %v510, 7
        %v512 = vsub.s32 0, %v511
        %v513 = vrot.slane %v500, %v512
        %v514 = vsel %vm508, %v513, %v505
        %v515 = vsel %vm509, %v513, %v504
        %v516 = vld [vmem:[%s315] sm:$0x1]
        %v517 = vrot.slane %v384, 1
        %v518 = vrot.slane %v385, 1
        %vm519 = vcmp.lt.s32.totalorder %v450, 7
        %v520 = vsel %vm519, %v517, %v518
        %v521 = vsel %vm519, %v518, %v517
        %v522 = vsel %vm454, 1, 0
        %v523 = vsel %vm455, 1, 0
        %vm524 = vcmp.eq.s32.totalorder %v522, 1
        %vm525 = vcmp.eq.s32.totalorder %v523, 1
        %v526 = vlaneseq
        %v527 = vshrl.u32 %v526, 7
        %v528 = vsub.s32 0, %v527
        %v529 = vrot.slane %v516, %v528
        %v530 = vsel %vm524, %v529, %v520
        %v531 = vsel %vm525, %v529, %v521
        %v532 = vsub.f32 %v384, %v514
        %v533 = vsub.f32 %v385, %v515
        %vm534 = vcmp.gt.f32.partialorder %v532, 0.0
        %vm535 = vcmp.gt.f32.partialorder %v533, 0.0
        %v536 = vsub.f32 %v384, %v530
        %v537 = vsub.f32 %v385, %v531
        %vm538 = vcmp.gt.f32.partialorder %v536, 0.0
        %vm539 = vcmp.gt.f32.partialorder %v537, 0.0
        %vm540 = vmor %vm534, %vm538
        %vm541 = vmor %vm535, %vm539
        %v542 = vsel %vm540, 10.0, %v384
        %v543 = vsel %vm541, 10.0, %v385
        %v544 = vadd.f32 %v542, 0.0
        %v545 = vadd.f32 %v543, 0.0
        %v546 = vmul.f32 %v389, %v437
        %v547 = vmul.f32 %v391, %v438
        %v548 = vmul.f32 %v399, %v447
        %v549 = vmul.f32 %v400, %v448
        %v550 = vmul.f32 %v546, %v548
        %v551 = vmul.f32 %v547, %v549
        %v552 = vsel %vm462, %v550, 0.0
        %v553 = vsel %vm462, %v551, 0.0
        %v554 = vadd.f32 %v552, %v553
        %v555 = vrot.slane %v554, 4
        %v556 = vadd.f32 %v554, %v555
        %v557 = vrot.slane %v556, 2
        %v558 = vadd.f32 %v556, %v557
        %v559 = vrot.slane %v558, 1
        %v560 = vadd.f32 %v558, %v559
        %v561 = vmul.f32 %v546, %v447
        %v562 = vmul.f32 %v547, %v448
        %v563 = vsel %vm462, %v561, 0.0
        %v564 = vsel %vm462, %v562, 0.0
        %v565 = vadd.f32 %v563, %v564
        %v566 = vrot.slane %v565, 4
        %v567 = vadd.f32 %v565, %v566
        %v568 = vrot.slane %v567, 2
        %v569 = vadd.f32 %v567, %v568
        %v570 = vrot.slane %v569, 1
        %v571 = vadd.f32 %v569, %v570
        %v572 = vsel %vm462, %v548, 0.0
        %v573 = vsel %vm462, %v549, 0.0
        %v574 = vadd.f32 %v572, %v573
        %v575 = vrot.slane %v574, 4
        %v576 = vadd.f32 %v574, %v575
        %v577 = vrot.slane %v576, 2
        %v578 = vadd.f32 %v576, %v577
        %v579 = vrot.slane %v578, 1
        %v580 = vadd.f32 %v578, %v579
        %v581 = vsub.f32 %v386, %v440
        %v582 = vsub.f32 %v387, %v442
        %v583 = vmax.f32 %v581, -34.538776
        %v584 = vmax.f32 %v582, -34.538776
        %v585 = vmul.f32 %v399, %v583
        %v586 = vmul.f32 %v400, %v584
        %v587 = vadd.f32 %v498, %v585
        %v588 = vadd.f32 %v499, %v586
        %v589 = vld [vmem:[%s306 + $0x1] sm:$0x1]
        %v590 = vrot.slane %v399, 7
        %v591 = vrot.slane %v400, 7
        %v592 = vsel %vm503, %v590, %v591
        %v593 = vsel %vm503, %v591, %v590
        %v594 = vlaneseq
        %v595 = vshrl.u32 %v594, 7
        %v596 = vsub.s32 0, %v595
        %v597 = vrot.slane %v589, %v596
        %v598 = vsel %vm508, %v597, %v593
        %v599 = vsel %vm509, %v597, %v592
        %v600 = vld [vmem:[%s315 + $0x1] sm:$0x1]
        %v601 = vrot.slane %v399, 1
        %v602 = vrot.slane %v400, 1
        %v603 = vsel %vm519, %v601, %v602
        %v604 = vsel %vm519, %v602, %v601
        %v605 = vlaneseq
        %v606 = vshrl.u32 %v605, 7
        %v607 = vsub.s32 0, %v606
        %v608 = vrot.slane %v600, %v607
        %v609 = vsel %vm524, %v608, %v603
        %v610 = vsel %vm525, %v608, %v604
        %v611 = vsub.f32 %v399, %v598
        %v612 = vsub.f32 %v400, %v599
        %vm613 = vcmp.gt.f32.partialorder %v611, 0.0
        %vm614 = vcmp.gt.f32.partialorder %v612, 0.0
        %v615 = vsub.f32 %v399, %v609
        %v616 = vsub.f32 %v400, %v610
        %vm617 = vcmp.gt.f32.partialorder %v615, 0.0
        %vm618 = vcmp.gt.f32.partialorder %v616, 0.0
        %vm619 = vmor %vm613, %vm617
        %vm620 = vmor %vm614, %vm618
        %v621 = vmul.f32 %v399, 5.0
        %v622 = vmul.f32 %v400, 5.0
        %v623 = vsel %vm619, 10.0, %v621
        %v624 = vsel %vm620, 10.0, %v622
        %v625 = vadd.f32 %v544, %v623
        %v626 = vadd.f32 %v545, %v624
        %v627 = vmul.f32 %v406, %v437
        %v628 = vmul.f32 %v408, %v438
        %v629 = vmul.f32 %v416, %v447
        %v630 = vmul.f32 %v417, %v448
        %v631 = vmul.f32 %v627, %v629
        %v632 = vmul.f32 %v628, %v630
        %v633 = vsel %vm462, %v631, 0.0
        %v634 = vsel %vm462, %v632, 0.0
        %v635 = vadd.f32 %v633, %v634
        %v636 = vrot.slane %v635, 4
        %v637 = vadd.f32 %v635, %v636
        %v638 = vrot.slane %v637, 2
        %v639 = vadd.f32 %v637, %v638
        %v640 = vrot.slane %v639, 1
        %v641 = vadd.f32 %v639, %v640
        %v642 = vmul.f32 %v627, %v447
        %v643 = vmul.f32 %v628, %v448
        %v644 = vsel %vm462, %v642, 0.0
        %v645 = vsel %vm462, %v643, 0.0
        %v646 = vadd.f32 %v644, %v645
        %v647 = vrot.slane %v646, 4
        %v648 = vadd.f32 %v646, %v647
        %v649 = vrot.slane %v648, 2
        %v650 = vadd.f32 %v648, %v649
        %v651 = vrot.slane %v650, 1
        %v652 = vadd.f32 %v650, %v651
        %v653 = vsel %vm462, %v629, 0.0
        %v654 = vsel %vm462, %v630, 0.0
        %v655 = vadd.f32 %v653, %v654
        %v656 = vrot.slane %v655, 4
        %v657 = vadd.f32 %v655, %v656
        %v658 = vrot.slane %v657, 2
        %v659 = vadd.f32 %v657, %v658
        %v660 = vrot.slane %v659, 1
        %v661 = vadd.f32 %v659, %v660
        %v662 = vsub.f32 %v403, %v440
        %v663 = vsub.f32 %v404, %v442
        %v664 = vmax.f32 %v662, -34.538776
        %v665 = vmax.f32 %v663, -34.538776
        %v666 = vmul.f32 %v416, %v664
        %v667 = vmul.f32 %v417, %v665
        %v668 = vadd.f32 %v587, %v666
        %v669 = vadd.f32 %v588, %v667
        %v670 = vld [vmem:[%s306 + $0x2] sm:$0x1]
        %v671 = vrot.slane %v416, 7
        %v672 = vrot.slane %v417, 7
        %v673 = vsel %vm503, %v671, %v672
        %v674 = vsel %vm503, %v672, %v671
        %v675 = vlaneseq
        %v676 = vshrl.u32 %v675, 7
        %v677 = vsub.s32 0, %v676
        %v678 = vrot.slane %v670, %v677
        %v679 = vsel %vm508, %v678, %v674
        %v680 = vsel %vm509, %v678, %v673
        %v681 = vld [vmem:[%s315 + $0x2] sm:$0x1]
        %v682 = vrot.slane %v416, 1
        %v683 = vrot.slane %v417, 1
        %v684 = vsel %vm519, %v682, %v683
        %v685 = vsel %vm519, %v683, %v682
        %v686 = vlaneseq
        %v687 = vshrl.u32 %v686, 7
        %v688 = vsub.s32 0, %v687
        %v689 = vrot.slane %v681, %v688
        %v690 = vsel %vm524, %v689, %v684
        %v691 = vsel %vm525, %v689, %v685
        %v692 = vsub.f32 %v416, %v679
        %v693 = vsub.f32 %v417, %v680
        %vm694 = vcmp.gt.f32.partialorder %v692, 0.0
        %vm695 = vcmp.gt.f32.partialorder %v693, 0.0
        %v696 = vsub.f32 %v416, %v690
        %v697 = vsub.f32 %v417, %v691
        %vm698 = vcmp.gt.f32.partialorder %v696, 0.0
        %vm699 = vcmp.gt.f32.partialorder %v697, 0.0
        %vm700 = vmor %vm694, %vm698
        %vm701 = vmor %vm695, %vm699
        %v702 = vmul.f32 %v416, 5.0
        %v703 = vmul.f32 %v417, 5.0
        %v704 = vsel %vm700, 10.0, %v702
        %v705 = vsel %vm701, 10.0, %v703
        %v706 = vadd.f32 %v625, %v704
        %v707 = vadd.f32 %v626, %v705
        %v708 = vmul.f32 %v423, %v437
        %v709 = vmul.f32 %v425, %v438
        %v710 = vmul.f32 %v433, %v447
        %v711 = vmul.f32 %v434, %v448
        %v712 = vmul.f32 %v708, %v710
        %v713 = vmul.f32 %v709, %v711
        %v714 = vsel %vm462, %v712, 0.0
        %v715 = vsel %vm462, %v713, 0.0
        %v716 = vadd.f32 %v714, %v715
        %v717 = vrot.slane %v716, 4
        %v718 = vadd.f32 %v716, %v717
        %v719 = vrot.slane %v718, 2
        %v720 = vadd.f32 %v718, %v719
        %v721 = vrot.slane %v720, 1
        %v722 = vadd.f32 %v720, %v721
        %v723 = vmul.f32 %v708, %v447
        %v724 = vmul.f32 %v709, %v448
        %v725 = vsel %vm462, %v723, 0.0
        %v726 = vsel %vm462, %v724, 0.0
        %v727 = vadd.f32 %v725, %v726
        %v728 = vrot.slane %v727, 4
        %v729 = vadd.f32 %v727, %v728
        %v730 = vrot.slane %v729, 2
        %v731 = vadd.f32 %v729, %v730
        %v732 = vrot.slane %v731, 1
        %v733 = vadd.f32 %v731, %v732
        %v734 = vsel %vm462, %v710, 0.0
        %v735 = vsel %vm462, %v711, 0.0
        %v736 = vadd.f32 %v734, %v735
        %v737 = vrot.slane %v736, 4
        %v738 = vadd.f32 %v736, %v737
        %v739 = vrot.slane %v738, 2
        %v740 = vadd.f32 %v738, %v739
        %v741 = vrot.slane %v740, 1
        %v742 = vadd.f32 %v740, %v741
        %v743 = vsub.f32 %v420, %v440
        %v744 = vsub.f32 %v421, %v442
        %v745 = vmax.f32 %v743, -34.538776
        %v746 = vmax.f32 %v744, -34.538776
        %v747 = vmul.f32 %v433, %v745
        %v748 = vmul.f32 %v434, %v746
        %v749 = vadd.f32 %v668, %v747
        %v750 = vadd.f32 %v669, %v748
        %v751 = vld [vmem:[%s306 + $0x3] sm:$0x1]
        %v752 = vrot.slane %v433, 7
        %v753 = vrot.slane %v434, 7
        %v754 = vsel %vm503, %v752, %v753
        %v755 = vsel %vm503, %v753, %v752
        %v756 = vlaneseq
        %v757 = vshrl.u32 %v756, 7
        %v758 = vsub.s32 0, %v757
        %v759 = vrot.slane %v751, %v758
        %v760 = vsel %vm508, %v759, %v755
        %v761 = vsel %vm509, %v759, %v754
        %v762 = vld [vmem:[%s315 + $0x3] sm:$0x1]
        %v763 = vrot.slane %v433, 1
        %v764 = vrot.slane %v434, 1
        %v765 = vsel %vm519, %v763, %v764
        %v766 = vsel %vm519, %v764, %v763
        %v767 = vlaneseq
        %v768 = vshrl.u32 %v767, 7
        %v769 = vsub.s32 0, %v768
        %v770 = vrot.slane %v762, %v769
        %v771 = vsel %vm524, %v770, %v765
        %v772 = vsel %vm525, %v770, %v766
        %v773 = vsub.f32 %v433, %v760
        %v774 = vsub.f32 %v434, %v761
        %vm775 = vcmp.gt.f32.partialorder %v773, 0.0
        %vm776 = vcmp.gt.f32.partialorder %v774, 0.0
        %v777 = vsub.f32 %v433, %v771
        %v778 = vsub.f32 %v434, %v772
        %vm779 = vcmp.gt.f32.partialorder %v777, 0.0
        %vm780 = vcmp.gt.f32.partialorder %v778, 0.0
        %vm781 = vmor %vm775, %vm779
        %vm782 = vmor %vm776, %vm780
        %v783 = vsel %vm781, 10.0, %v433
        %v784 = vsel %vm782, 10.0, %v434
        %v785 = vadd.f32 %v706, %v783
        %v786 = vadd.f32 %v707, %v784
        %v787 = vsel %vm462, %v447, 0.0
        %v788 = vsel %vm462, %v448, 0.0
        %v789 = vadd.f32 %v787, %v788
        %v790 = vrot.slane %v789, 4
        %v791 = vadd.f32 %v789, %v790
        %v792 = vrot.slane %v791, 2
        %v793 = vadd.f32 %v791, %v792
        %v794 = vrot.slane %v793, 1
        %v795 = vadd.f32 %v793, %v794
        %v796 = vmul.f32 %v785, %v749
        %v797 = vmul.f32 %v786, %v750
        %v798 = vmul.f32 %v796, %v447
        %v799 = vmul.f32 %v797, %v448
        %v800 = vsel %vm462, %v798, 0.0
        %v801 = vsel %vm462, %v799, 0.0
        %v802 = vadd.f32 %v800, %v801
        %v803 = vrot.slane %v802, 4
        %v804 = vadd.f32 %v802, %v803
        %v805 = vrot.slane %v804, 2
        %v806 = vadd.f32 %v804, %v805
        %v807 = vrot.slane %v806, 1
        %v808 = vadd.f32 %v806, %v807
        %vm809 = vcmask 1040384
        %v810 = vsel %vm809, %v471, %v560
        %vm811 = vcmask 1041408
        %v812 = vsel %vm811, %v810, %v641
        %vm813 = vcmask 1042432
        %v814 = vsel %vm813, %v812, %v722
        %vm815 = vcmask 1043456
        %v816 = vsel %vm815, %v814, %v482
        %vm817 = vcmask 1044480
        %v818 = vsel %vm817, %v816, %v571
        %vm819 = vcmask 1045504
        %v820 = vsel %vm819, %v818, %v652
        %vm821 = vcmask 1046528
        %v822 = vsel %vm821, %v820, %v733
        %v823 = vsel %vm809, %v491, %v580
        %v824 = vsel %vm811, %v823, %v661
        %v825 = vsel %vm813, %v824, %v742
        %v826 = vsel %vm815, %v825, %v795
        %v827 = vsel %vm817, %v826, %v808
        %v828 = vsel %vm819, %v827, 0.0
        %829 = vst.msk [vmem:[%s354] sm:$0xff] %vm462, %v822
        %830 = vst.msk [vmem:[%s354 + $0x8] sm:$0xff] %vm462, %v828
        %s831 = sand.u32 %s161, 1
        %s832 = scalar_lea.sflag [#allocation4], %s831
        %s833 = sand.u32 %s161, 1
        %s834 = smul.addr %s833, 16
        %s835 = scalar_lea.vmem [#allocation10], %s834
        // Predicated region
        $region53: #{tpu_custom_call.1} parent=35 // pred_check
          %p836 = pneg %p171
        $region54: #{tpu_custom_call.1} parent=35 // pred_check_branch
          %838 = sbr.rel (%p836) target = $region56
        $region55: #{tpu_custom_call.1} parent=35 // pred_region
          %s840 = ssub.s32 256, 256
          %841 = vsyncadd %s832, %s840
          %s842 = smul.addr %s32, 2
          %s843 = smul.addr %s31, 2
          %s844 = sadd.s32 %s842, %s843
          %s845 = smul.addr %s844, 128
          %s846 = scalar_lea.hbm %s4, %s845
          %s847 = sshll.u32 %s835, 4
          %s848 = int_to_ptr.vmem [resolvable:$true] %s847
          %853 = dma.vmem_to_hbm [thread:$0]  %s848, 256, %s846, %s832, 128, 128, 8
        $region56: #{tpu_custom_call.1} parent=35 // pred_fallthru
          _
      $region36: #{tpu_custom_call.1} parent=5 // pred_fallthru
        _
      %p854 = scmp.le.s32.totalorder 2, %s22
      // Predicated region
      $region57: #{tpu_custom_call.1} parent=5 // pred_check
        %p855 = pneg %p854
      $region58: #{tpu_custom_call.1} parent=5 // pred_check_branch
        %857 = sbr.rel (%p855) target = $region60
      $region59: #{tpu_custom_call.1} parent=5 // pred_region
        %s858 = ssub.s32 %s22, 2
        // Predicated region
        $region61: #{tpu_custom_call.1} parent=59 // pred_check
          %p859 = pneg %p177
        $region62: #{tpu_custom_call.1} parent=59 // pred_check_branch
          %861 = sbr.rel (%p859) target = $region64
        $region63: #{tpu_custom_call.1} parent=59 // pred_region
          %s862 = sand.u32 %s162, 1
          %s863 = scalar_lea.sflag [#allocation4], %s862
          %s864 = sand.u32 %s162, 1
          %s865 = smul.addr %s864, 16
          %s866 = scalar_lea.vmem [#allocation10], %s865
          %867 = dma.done %s863, 256
        $region64: #{tpu_custom_call.1} parent=59 // pred_fallthru
          _
      $region60: #{tpu_custom_call.1} parent=5 // pred_fallthru
        _
    $region6: #{tpu_custom_call.1} parent=1 // loop_footer
      %s26 = sadd.s32 1, %s22
    $region7: #{tpu_custom_call.1} parent=1 // loop_footer_branch
      %21 = sbr.rel target = $region3
    $region8: #{tpu_custom_call.1} parent=1 // loop_exit
      _
    %868 = vsyncpa [#allocation3], 1
    %s869 = scalar_lea.sflag [#allocation3], 1
    %870 = vsyncpa %s869, 1
    %871 = vsyncpa [#allocation6], 1
    %s872 = scalar_lea.sflag [#allocation6], 1
    %873 = vsyncpa %s872, 1
    %874 = vsyncpa [#allocation9], 1
    %s875 = scalar_lea.sflag [#allocation9], 1
    %876 = vsyncpa %s875, 1
    %877 = vsyncpa [#allocation4], 1
    %s878 = scalar_lea.sflag [#allocation4], 1
    %879 = vsyncpa %s878, 1

</llo_original>
